<compile_context>
chip_gen: v5e
topology: v5e:2x2
jax: 0.10.0
libtpu: 0.0.40
codegen_flags: <defaults>
</compile_context>

<pallas_src>
import numpy as np
import jax
import jax.numpy as jnp
from jax.experimental import pallas as pl
from jax.experimental.pallas import tpu as pltpu

# ---------------- config (small shapes, mirrors set_args()/check_args()) -----
SELF_PATCH_NUM = 4        # config.self_patch_num
PATCH_SIZE = 16           # config.patch_size
DISTILL_LAYER = 2         # config.distillation_layer (unused by the tiny net)
C1, C2, HID = 8, 16, 32   # student-net channel widths

IMNET_MEAN = (0.485, 0.456, 0.406)
IMNET_STD = (0.229, 0.224, 0.225)

H1 = W1 = PATCH_SIZE // 2          # 8  : conv1 output grid (3x3, stride 2, pad 1)
H2 = W2 = H1 // 2                  # 4  : conv2 output grid (3x3, stride 2, pad 1)
NTOT = 2 * SELF_PATCH_NUM          # 8  : dist + ref patches batched together
NP_ = SELF_PATCH_NUM               # 4
D_IN = PATCH_SIZE * PATCH_SIZE * 3 # 768: flattened HWC patch
D1 = H1 * W1 * C1                  # 512: flattened conv1 output per patch
D2 = H2 * W2 * C2                  # 256: flattened conv2 output per patch
K1 = 3 * 3 * 3                     # 27
K2 = 3 * 3 * C1                    # 72
HID_EXT = HID + 8                  # 40 : hidden + const-1 channel (fc2 bias) + pad
BVEC_LEN = 1024                    # packed bias/params vector (lane-aligned sections)
B1_OFF, B2_OFF, FC1B_OFF, FC2W_OFF = 0, D1, D1 + D2, 896


# ---------------- the fused Pallas kernel -------------------------------------
def _metric_fused_kernel(xp_ref, w1_ref, w2_ref, bvec_ref, afc_ref, o_ref):
    # packed bias / small-param vector (all slice starts are 128-lane aligned)
    b1 = bvec_ref[:, B1_OFF:B1_OFF + D1]                # (1, 512) conv1 bias (+norm fold)
    b2 = bvec_ref[:, B2_OFF:B2_OFF + D2]                # (1, 256) conv2 bias
    fc1b = bvec_ref[:, FC1B_OFF:FC1B_OFF + HID_EXT]     # (1, 40)  fc1 bias + const-1 chan
    fc2w = bvec_ref[:, FC2W_OFF:FC2W_OFF + HID_EXT]     # (1, 40)  fc2 weights/Np + bias/Np

    # conv1 (3x3 s2 p1) + ImageNet normalization, all 8 patches: one lane-dense matmul.
    y1 = jnp.dot(xp_ref[...], w1_ref[...], preferred_element_type=jnp.float32)  # (8, 512)
    y1 = jnp.maximum(y1 + b1, 0.0)

    # conv2 (3x3 s2 p1), evaluated only at the 16 surviving positions per patch.
    y2 = jnp.dot(y1, w2_ref[...], preferred_element_type=jnp.float32)           # (8, 256)
    y2 = jnp.maximum(y2 + b2, 0.0)

    # GAP + fusion fc1 (dist half / ref half), folded into the precomputed afc matrix.
    h = jnp.dot(y2[0:NP_, :], afc_ref[0:D2, :], preferred_element_type=jnp.float32)
    h = h + jnp.dot(y2[NP_:NTOT, :], afc_ref[D2:2 * D2, :],
                    preferred_element_type=jnp.float32)
    h = jnp.maximum(h + fc1b, 0.0)                                               # (4, 40)

    # fc2 + fc2 bias + per-patch mean, folded into a weighted full reduction.
    s = jnp.sum(h * fc2w, axis=1, keepdims=True)                                 # (4, 1)
    o_ref[...] = jnp.sum(s, axis=0, keepdims=True)                               # (1, 1)


def metric_fused(xp, w1_big, w2_big, bvec, afc):
    """Whole model forward (conv1/conv2/GAP/fc1/fc2/mean) in one grid-less pallas_call."""
    vspec = pl.BlockSpec(memory_space=pltpu.MemorySpace.VMEM)
    return pl.pallas_call(
        _metric_fused_kernel,
        out_shape=jax.ShapeDtypeStruct((1, 1), jnp.float32),
        in_specs=[vspec, vspec, vspec, vspec, vspec],
        out_specs=vspec,
    )(xp, w1_big, w2_big, bvec, afc)


# ---------------- synthetic weights (stand-in for the torch checkpoint) --------
def init_params(key):
    ks = jax.random.split(key, 8)
    s = 0.1
    return {
        "conv1_w": jax.random.normal(ks[0], (K1, C1), jnp.float32) * s,
        "conv1_b": jax.random.normal(ks[1], (1, C1), jnp.float32) * s,
        "conv2_w": jax.random.normal(ks[2], (K2, C2), jnp.float32) * s,
        "conv2_b": jax.random.normal(ks[3], (1, C2), jnp.float32) * s,
        "fc1_w": jax.random.normal(ks[4], (2 * C2, HID), jnp.float32) * s,
        "fc1_b": jax.random.normal(ks[5], (1, HID), jnp.float32) * s,
        "fc2_w": jax.random.normal(ks[6], (HID, 1), jnp.float32) * s,
        "fc2_b": jax.random.normal(ks[7], (1, 1), jnp.float32) * s,
    }


# ---------------- one-time host-side expansion of the small conv weights --------
def build_fused_params(params):
    w1 = np.asarray(params["conv1_w"], np.float32)              # (27, 8)
    b1 = np.asarray(params["conv1_b"], np.float32).reshape(-1)  # (8,)
    w2 = np.asarray(params["conv2_w"], np.float32)              # (72, 16)
    b2 = np.asarray(params["conv2_b"], np.float32).reshape(-1)  # (16,)
    fc1w = np.asarray(params["fc1_w"], np.float32)               # (32, 32)
    fc1b = np.asarray(params["fc1_b"], np.float32).reshape(-1)   # (32,)
    fc2w = np.asarray(params["fc2_w"], np.float32).reshape(-1)   # (32,)
    fc2b = float(np.asarray(params["fc2_b"], np.float32).reshape(()))
    mean = np.asarray(IMNET_MEAN, np.float32)
    std = np.asarray(IMNET_STD, np.float32)

    # conv1 expanded to a dense per-patch linear map; (x-mean)/std folded in.
    w1_big = np.zeros((D_IN, D1), np.float32)
    b1_big = np.zeros((D1,), np.float32)
    for oy in range(H1):
        for ox in range(W1):
            p1 = oy * W1 + ox
            b1_big[p1 * C1:(p1 + 1) * C1] = b1
            for di in range(3):
                for dj in range(3):
                    iy, ix = 2 * oy + di - 1, 2 * ox + dj - 1
                    if 0 <= iy < PATCH_SIZE and 0 <= ix < PATCH_SIZE:
                        for c in range(3):
                            k = (di * 3 + dj) * 3 + c
                            row = (iy * PATCH_SIZE + ix) * 3 + c
                            w1_big[row, p1 * C1:(p1 + 1) * C1] += w1[k] / std[c]
                            b1_big[p1 * C1:(p1 + 1) * C1] -= w1[k] * mean[c] / std[c]

    # conv2 expanded to a dense per-patch linear map, only the surviving outputs.
    w2_big = np.zeros((D1, D2), np.float32)
    b2_big = np.zeros((D2,), np.float32)
    for qy in range(H2):
        for qx in range(W2):
            p2 = qy * W2 + qx
            b2_big[p2 * C2:(p2 + 1) * C2] = b2
            for di in range(3):
                for dj in range(3):
                    oy, ox = 2 * qy + di - 1, 2 * qx + dj - 1
                    if 0 <= oy < H1 and 0 <= ox < W1:
                        p1 = oy * W1 + ox
                        for c in range(C1):
                            k = (di * 3 + dj) * C1 + c
                            w2_big[p1 * C1 + c, p2 * C2:(p2 + 1) * C2] += w2[k]

    # GAP (1/16) + fc1 dist/ref halves, plus a zero block for the const-1 channel.
    afc = np.zeros((2 * D2, HID_EXT), np.float32)
    for p2 in range(H2 * W2):
        afc[p2 * C2:(p2 + 1) * C2, 0:HID] = fc1w[0:C2] / float(H2 * W2)
        afc[D2 + p2 * C2:D2 + (p2 + 1) * C2, 0:HID] = fc1w[C2:2 * C2] / float(H2 * W2)

    fc1b_ext = np.zeros((HID_EXT,), np.float32)
    fc1b_ext[0:HID] = fc1b
    fc1b_ext[HID] = 1.0                              # relu(1)=1 -> constant channel
    fc2w_ext = np.zeros((HID_EXT,), np.float32)
    fc2w_ext[0:HID] = fc2w / float(SELF_PATCH_NUM)   # fold per-patch mean into fc2
    fc2w_ext[HID] = fc2b / float(SELF_PATCH_NUM)     # fold fc2 bias via const channel

    bvec = np.zeros((1, BVEC_LEN), np.float32)
    bvec[0, B1_OFF:B1_OFF + D1] = b1_big
    bvec[0, B2_OFF:B2_OFF + D2] = b2_big
    bvec[0, FC1B_OFF:FC1B_OFF + HID_EXT] = fc1b_ext
    bvec[0, FC2W_OFF:FC2W_OFF + HID_EXT] = fc2w_ext

    return dict(w1_big=jnp.asarray(w1_big), w2_big=jnp.asarray(w2_big),
                bvec=jnp.asarray(bvec), afc=jnp.asarray(afc))


# ---------------- im2col helper (used only by the pure-JAX reference) ----------
def im2col(x, k, stride, pad):
    x = jnp.pad(x, ((0, 0), (pad, pad), (pad, pad), (0, 0)))
    N, Hp, Wp, C = x.shape
    Ho = (Hp - k) // stride + 1
    Wo = (Wp - k) // stride + 1
    cols = []
    for i in range(k):
        for j in range(k):
            cols.append(x[:, i:i + stride * Ho:stride, j:j + stride * Wo:stride, :])
    return jnp.concatenate(cols, axis=-1), Ho, Wo


# ---------------- the model -----------------------------------------------------
class MetricModelPallas:
    """JAX/Pallas re-implementation of MetricModel.forward (one fused kernel/forward)."""

    def __init__(self):
        self.self_patch_num = SELF_PATCH_NUM
        self.patch_size = PATCH_SIZE
        self.params = init_params(jax.random.PRNGKey(42))
        self.lower_better = False
        self.fused = build_fused_params(self.params)
        self._fwd = jax.jit(self._forward_impl)

    # -------- deterministic crop (stand-in for transforms.RandomCrop) ----------
    def _crop_patches(self, img_chw):
        C, H, W = img_chw.shape
        P = self.patch_size
        img_hwc = jnp.transpose(img_chw, (1, 2, 0))               # CHW -> HWC
        patches = []
        for idx in range(self.self_patch_num):
            # TODO(synk): deterministic offsets in place of transforms.RandomCrop
            oy = (idx * 3) % (H - P + 1)
            ox = (idx * 5) % (W - P + 1)
            patches.append(img_hwc[oy:oy + P, ox:ox + P, :])
        return jnp.stack(patches, axis=0)                         # (Np, P, P, 3)

    # -------- fused forward ------------------------------------------------------
    def _forward_impl(self, ref_chw, dist_chw):
        dist_p = self._crop_patches(dist_chw)                     # (Np, P, P, 3)
        ref_p = self._crop_patches(ref_chw)
        # normalization is folded into w1_big / bvec -> glue is just crop + reshape
        xp = jnp.concatenate([dist_p, ref_p], axis=0).reshape(NTOT, D_IN)   # (8, 768)
        f = self.fused
        score = metric_fused(xp, f["w1_big"], f["w2_big"], f["bvec"], f["afc"])
        return score[0, 0]

    def forward(self, ref, dist):
        return self._fwd(ref, dist)

    # -------- pure-JAX reference (raw weights, explicit norm/convs) ------------
    def reference(self, ref_chw, dist_chw):
        mean = jnp.asarray(IMNET_MEAN, jnp.float32)
        std = jnp.asarray(IMNET_STD, jnp.float32)
        p = self.params
        hp = jax.lax.Precision.HIGHEST

        def feats_of(img):
            patches = self._crop_patches(img)
            xn = (patches - mean) / std
            cols, Ho, Wo = im2col(xn, 3, 2, 1)
            y = jnp.maximum(jnp.dot(cols.reshape(-1, K1), p["conv1_w"], precision=hp)
                            + p["conv1_b"], 0.0)
            x1 = y.reshape(self.self_patch_num, Ho, Wo, C1)
            cols, Ho2, Wo2 = im2col(x1, 3, 2, 1)
            y = jnp.maximum(jnp.dot(cols.reshape(-1, K2), p["conv2_w"], precision=hp)
                            + p["conv2_b"], 0.0)
            x2 = y.reshape(self.self_patch_num, Ho2 * Wo2, C2)
            return jnp.mean(x2, axis=1)                            # (Np, C2)

        dist_f = feats_of(dist_chw)
        ref_f = feats_of(ref_chw)
        fused = jnp.concatenate([dist_f, ref_f], axis=-1)
        h = jnp.maximum(jnp.dot(fused, p["fc1_w"], precision=hp) + p["fc1_b"], 0.0)
        per_patch = jnp.dot(h, p["fc2_w"], precision=hp) + p["fc2_b"]
        return jnp.mean(per_patch)


# ---------------- demo -----------------------------------------------------------
if __name__ == "__main__":
    key = jax.random.PRNGKey(0)
    kr, kd = jax.random.split(key)
    # small CHW images (like the torch module's ref / dist inputs)
    ref_img = jax.random.uniform(kr, (3, 24, 24), jnp.float32)
    dist_img = jax.random.uniform(kd, (3, 24, 24), jnp.float32)

    model = MetricModelPallas()
    score = model.forward(ref_img, dist_img)
    jax.block_until_ready(score)
    assert score.shape == () and score.dtype == jnp.float32

    expected = model.reference(ref_img, dist_img)
    assert jnp.allclose(score, expected, rtol=1e-2, atol=1e-3), (float(score), float(expected))
    print("KERNEL_OK")
</pallas_src>

<mosaic_0001>
module attributes {stable_mosaic.version = 11 : i64} {
  func.func @_metric_fused_kernel(%arg0: memref<8x768xf32, #tpu.memory_space<vmem>>, %arg1: memref<768x512xf32, #tpu.memory_space<vmem>>, %arg2: memref<512x256xf32, #tpu.memory_space<vmem>>, %arg3: memref<1x1024xf32, #tpu.memory_space<vmem>>, %arg4: memref<512x40xf32, #tpu.memory_space<vmem>>, %arg5: memref<1x1xf32, #tpu.memory_space<vmem>>) attributes {dimension_semantics = [], scalar_prefetch = 0 : i64, scratch_operands = 0 : i64, tpu.core_type = #tpu.core_type<tc>} {
    %c0 = arith.constant 0 : index
    %c0_0 = arith.constant 0 : index
    %0 = vector.load %arg3[%c0, %c0_0] : memref<1x1024xf32, #tpu.memory_space<vmem>>, vector<1x512xf32>
    %c0_1 = arith.constant 0 : index
    %c512 = arith.constant 512 : index
    %1 = vector.load %arg3[%c0_1, %c512] : memref<1x1024xf32, #tpu.memory_space<vmem>>, vector<1x256xf32>
    %c0_2 = arith.constant 0 : index
    %c768 = arith.constant 768 : index
    %2 = vector.load %arg3[%c0_2, %c768] : memref<1x1024xf32, #tpu.memory_space<vmem>>, vector<1x40xf32>
    %c0_3 = arith.constant 0 : index
    %c896 = arith.constant 896 : index
    %3 = vector.load %arg3[%c0_3, %c896] : memref<1x1024xf32, #tpu.memory_space<vmem>>, vector<1x40xf32>
    %c0_4 = arith.constant 0 : index
    %c0_5 = arith.constant 0 : index
    %4 = vector.load %arg0[%c0_4, %c0_5] : memref<8x768xf32, #tpu.memory_space<vmem>>, vector<8x768xf32>
    %c0_6 = arith.constant 0 : index
    %c0_7 = arith.constant 0 : index
    %5 = vector.load %arg1[%c0_6, %c0_7] : memref<768x512xf32, #tpu.memory_space<vmem>>, vector<768x512xf32>
    %cst = arith.constant dense<0.000000e+00> : vector<8x512xf32>
    %6 = tpu.matmul %4, %5, %cst {dimension_numbers = #tpu.dot_dimension_numbers<[1], [0], [0], [1], [0, 0, 1, 1], [], []>} : vector<8x768xf32>, vector<768x512xf32>, vector<8x512xf32> -> vector<8x512xf32>
    %7 = vector.broadcast %0 : vector<1x512xf32> to vector<8x512xf32>
    %8 = arith.addf %6, %7 : vector<8x512xf32>
    %cst_8 = arith.constant 0.000000e+00 : f32
    %9 = vector.broadcast %cst_8 : f32 to vector<8x512xf32>
    %10 = arith.maximumf %8, %9 : vector<8x512xf32>
    %c0_9 = arith.constant 0 : index
    %c0_10 = arith.constant 0 : index
    %11 = vector.load %arg2[%c0_9, %c0_10] : memref<512x256xf32, #tpu.memory_space<vmem>>, vector<512x256xf32>
    %cst_11 = arith.constant dense<0.000000e+00> : vector<8x256xf32>
    %12 = tpu.matmul %10, %11, %cst_11 {dimension_numbers = #tpu.dot_dimension_numbers<[1], [0], [0], [1], [0, 0, 1, 1], [], []>} : vector<8x512xf32>, vector<512x256xf32>, vector<8x256xf32> -> vector<8x256xf32>
    %13 = vector.broadcast %1 : vector<1x256xf32> to vector<8x256xf32>
    %14 = arith.addf %12, %13 : vector<8x256xf32>
    %cst_12 = arith.constant 0.000000e+00 : f32
    %15 = vector.broadcast %cst_12 : f32 to vector<8x256xf32>
    %16 = arith.maximumf %14, %15 : vector<8x256xf32>
    %17 = vector.extract_strided_slice %16 {offsets = [0, 0], sizes = [4, 256], strides = [1, 1]} : vector<8x256xf32> to vector<4x256xf32>
    %c0_13 = arith.constant 0 : index
    %c0_14 = arith.constant 0 : index
    %18 = vector.load %arg4[%c0_13, %c0_14] : memref<512x40xf32, #tpu.memory_space<vmem>>, vector<256x40xf32>
    %cst_15 = arith.constant dense<0.000000e+00> : vector<4x40xf32>
    %19 = tpu.matmul %17, %18, %cst_15 {dimension_numbers = #tpu.dot_dimension_numbers<[1], [0], [0], [1], [0, 0, 1, 1], [], []>} : vector<4x256xf32>, vector<256x40xf32>, vector<4x40xf32> -> vector<4x40xf32>
    %20 = vector.extract_strided_slice %16 {offsets = [4, 0], sizes = [4, 256], strides = [1, 1]} : vector<8x256xf32> to vector<4x256xf32>
    %c256 = arith.constant 256 : index
    %c0_16 = arith.constant 0 : index
    %21 = vector.load %arg4[%c256, %c0_16] : memref<512x40xf32, #tpu.memory_space<vmem>>, vector<256x40xf32>
    %cst_17 = arith.constant dense<0.000000e+00> : vector<4x40xf32>
    %22 = tpu.matmul %20, %21, %cst_17 {dimension_numbers = #tpu.dot_dimension_numbers<[1], [0], [0], [1], [0, 0, 1, 1], [], []>} : vector<4x256xf32>, vector<256x40xf32>, vector<4x40xf32> -> vector<4x40xf32>
    %23 = arith.addf %19, %22 : vector<4x40xf32>
    %24 = vector.broadcast %2 : vector<1x40xf32> to vector<4x40xf32>
    %25 = arith.addf %23, %24 : vector<4x40xf32>
    %cst_18 = arith.constant 0.000000e+00 : f32
    %26 = vector.broadcast %cst_18 : f32 to vector<4x40xf32>
    %27 = arith.maximumf %25, %26 : vector<4x40xf32>
    %28 = vector.broadcast %3 : vector<1x40xf32> to vector<4x40xf32>
    %29 = arith.mulf %27, %28 : vector<4x40xf32>
    %cst_19 = arith.constant dense<0.000000e+00> : vector<4xf32>
    %30 = vector.multi_reduction <add>, %29, %cst_19 [1] : vector<4x40xf32> to vector<4xf32>
    %31 = vector.shape_cast %30 : vector<4xf32> to vector<4x1xf32>
    %cst_20 = arith.constant dense<0.000000e+00> : vector<1xf32>
    %32 = vector.multi_reduction <add>, %31, %cst_20 [0] : vector<4x1xf32> to vector<1xf32>
    %33 = vector.shape_cast %32 : vector<1xf32> to vector<1x1xf32>
    %c0_21 = arith.constant 0 : index
    %c0_22 = arith.constant 0 : index
    %34 = vector.load %arg5[%c0_21, %c0_22] : memref<1x1xf32, #tpu.memory_space<vmem>>, vector<1x1xf32>
    tpu.vector_store %arg5[%c0_21, %c0_22], %33 {strides = array<i32>} : memref<1x1xf32, #tpu.memory_space<vmem>>, vector<1x1xf32>,
    return
  }
}

</mosaic_0001>

<llo_original>
// kernel: _forward_impl.1
$region0: #{_forward_impl.1}
  #allocation0 [shape = 'u32[]', space=smem, size = 0x4, offset = 0x4, fixed_abs, tag = 'smem constant byte address 0x4 - core index']
  #allocation1 [shape = 'u32[72,128]{1,0:T(1,128)}', space=vmem, size = 0x9000, scoped, tag = 'internal scratch']
  %s0 = inlined_call_operand.vmem [shape: f32[8,768], index: 0, kind: input, shape index: {}]
  %s1 = inlined_call_operand.vmem [shape: f32[768,512], index: 1, kind: input, shape index: {}]
  %s2 = inlined_call_operand.vmem [shape: f32[512,256], index: 2, kind: input, shape index: {}]
  %s3 = inlined_call_operand.vmem [shape: f32[1,1024], index: 3, kind: input, shape index: {}]
  %s4 = inlined_call_operand.vmem [shape: f32[512,40], index: 4, kind: input, shape index: {}]
  %s5 = inlined_call_operand.hbm [shape: f32[1,1], index: 5, kind: output, shape index: {}]
  %s6 = sld [smem:[#allocation0]]
  $region30: #{_forward_impl.1} parent=0
    _
  %s8 = ssub.s32 1, %s6
  %s9 = scalar_select 0, %s8, %s6
  $region1: #{_forward_impl.1} parent=0
    #allocation2 [shape = 'u8[512]{0}', space=vmem, size = 0x400, scoped, tag = 'output window, operand 0, single buffered']
    #allocation3 [shape = 's32[1]{0}', space=sflag, size = 0x4, scoped, tag = 'scoped memory for _forward_impl.1']
    %10 = vsyncpa [#allocation3], 0
    // Predicated region
    $region2: #{_forward_impl.1} parent=1 // pred_check
      _
    $region3: #{_forward_impl.1} parent=1 // pred_check_branch
      %12 = sbr.rel (0) target = $region5
    $region4: #{_forward_impl.1} parent=1 // pred_region
      _
    $region5: #{_forward_impl.1} parent=1 // pred_fallthru
      _
    // Predicated region
    $region6: #{_forward_impl.1} parent=1 // pred_check
      _
    $region7: #{_forward_impl.1} parent=1 // pred_check_branch
      %14 = sbr.rel (0) target = $region9
    $region8: #{_forward_impl.1} parent=1 // pred_region
      _
    $region9: #{_forward_impl.1} parent=1 // pred_fallthru
      _
    // Predicated region
    $region10: #{_forward_impl.1} parent=1 // pred_check
      _
    $region11: #{_forward_impl.1} parent=1 // pred_check_branch
      %16 = sbr.rel (0) target = $region13
    $region12: #{_forward_impl.1} parent=1 // pred_region
      _
    $region13: #{_forward_impl.1} parent=1 // pred_fallthru
      _
    // Predicated region
    $region14: #{_forward_impl.1} parent=1 // pred_check
      _
    $region15: #{_forward_impl.1} parent=1 // pred_check_branch
      %18 = sbr.rel (0) target = $region17
    $region16: #{_forward_impl.1} parent=1 // pred_region
      _
    $region17: #{_forward_impl.1} parent=1 // pred_fallthru
      _
    // Predicated region
    $region18: #{_forward_impl.1} parent=1 // pred_check
      _
    $region19: #{_forward_impl.1} parent=1 // pred_check_branch
      %20 = sbr.rel (0) target = $region21
    $region20: #{_forward_impl.1} parent=1 // pred_region
      _
    $region21: #{_forward_impl.1} parent=1 // pred_fallthru
      _
    %v21 = vld [vmem:[%s3] sm:$0xf]
    %v22 = vld [vmem:[%s3 + $0x4] sm:$0x3]
    %v23 = vld [vmem:[%s3 + $0x6] sm:$0x1]
    %v24 = vld [vmem:[%s3 + $0x7] sm:$0x1]
    %v25 = vld [vmem:[%s0] sm:$0xff]
    %v26 = vld [vmem:[%s0 + $0x8] sm:$0xff]
    %v27 = vld [vmem:[%s0 + $0x10] sm:$0xff]
    %v28 = vld [vmem:[%s0 + $0x18] sm:$0xff]
    %v29 = vld [vmem:[%s0 + $0x20] sm:$0xff]
    %v30 = vld [vmem:[%s0 + $0x28] sm:$0xff]
    %v31 = vld [vmem:[%s1] sm:$0xff]
    %v32 = vld [vmem:[%s1 + $0x8] sm:$0xff]
    %v33 = vld [vmem:[%s1 + $0x10] sm:$0xff]
    %v34 = vld [vmem:[%s1 + $0x18] sm:$0xff]
    %v35 = vld [vmem:[%s1 + $0x20] sm:$0xff]
    %v36 = vld [vmem:[%s1 + $0x28] sm:$0xff]
    %v37 = vld [vmem:[%s1 + $0x30] sm:$0xff]
    %v38 = vld [vmem:[%s1 + $0x38] sm:$0xff]
    %v39 = vld [vmem:[%s1 + $0x40] sm:$0xff]
    %v40 = vld [vmem:[%s1 + $0x48] sm:$0xff]
    %v41 = vld [vmem:[%s1 + $0x50] sm:$0xff]
    %v42 = vld [vmem:[%s1 + $0x58] sm:$0xff]
    %v43 = vld [vmem:[%s1 + $0x60] sm:$0xff]
    %v44 = vld [vmem:[%s1 + $0x68] sm:$0xff]
    %v45 = vld [vmem:[%s1 + $0x70] sm:$0xff]
    %v46 = vld [vmem:[%s1 + $0x78] sm:$0xff]
    %v47 = vld [vmem:[%s1 + $0x80] sm:$0xff]
    %v48 = vld [vmem:[%s1 + $0x88] sm:$0xff]
    %v49 = vld [vmem:[%s1 + $0x90] sm:$0xff]
    %v50 = vld [vmem:[%s1 + $0x98] sm:$0xff]
    %v51 = vld [vmem:[%s1 + $0xa0] sm:$0xff]
    %v52 = vld [vmem:[%s1 + $0xa8] sm:$0xff]
    %v53 = vld [vmem:[%s1 + $0xb0] sm:$0xff]
    %v54 = vld [vmem:[%s1 + $0xb8] sm:$0xff]
    %v55 = vld [vmem:[%s1 + $0xc0] sm:$0xff]
    %v56 = vld [vmem:[%s1 + $0xc8] sm:$0xff]
    %v57 = vld [vmem:[%s1 + $0xd0] sm:$0xff]
    %v58 = vld [vmem:[%s1 + $0xd8] sm:$0xff]
    %v59 = vld [vmem:[%s1 + $0xe0] sm:$0xff]
    %v60 = vld [vmem:[%s1 + $0xe8] sm:$0xff]
    %v61 = vld [vmem:[%s1 + $0xf0] sm:$0xff]
    %v62 = vld [vmem:[%s1 + $0xf8] sm:$0xff]
    %v63 = vld [vmem:[%s1 + $0x100] sm:$0xff]
    %v64 = vld [vmem:[%s1 + $0x108] sm:$0xff]
    %v65 = vld [vmem:[%s1 + $0x110] sm:$0xff]
    %v66 = vld [vmem:[%s1 + $0x118] sm:$0xff]
    %v67 = vld [vmem:[%s1 + $0x120] sm:$0xff]
    %v68 = vld [vmem:[%s1 + $0x128] sm:$0xff]
    %v69 = vld [vmem:[%s1 + $0x130] sm:$0xff]
    %v70 = vld [vmem:[%s1 + $0x138] sm:$0xff]
    %v71 = vld [vmem:[%s1 + $0x140] sm:$0xff]
    %v72 = vld [vmem:[%s1 + $0x148] sm:$0xff]
    %v73 = vld [vmem:[%s1 + $0x150] sm:$0xff]
    %v74 = vld [vmem:[%s1 + $0x158] sm:$0xff]
    %v75 = vld [vmem:[%s1 + $0x160] sm:$0xff]
    %v76 = vld [vmem:[%s1 + $0x168] sm:$0xff]
    %v77 = vld [vmem:[%s1 + $0x170] sm:$0xff]
    %v78 = vld [vmem:[%s1 + $0x178] sm:$0xff]
    %v79 = vld [vmem:[%s1 + $0x180] sm:$0xff]
    %v80 = vld [vmem:[%s1 + $0x188] sm:$0xff]
    %v81 = vld [vmem:[%s1 + $0x190] sm:$0xff]
    %v82 = vld [vmem:[%s1 + $0x198] sm:$0xff]
    %v83 = vld [vmem:[%s1 + $0x1a0] sm:$0xff]
    %v84 = vld [vmem:[%s1 + $0x1a8] sm:$0xff]
    %v85 = vld [vmem:[%s1 + $0x1b0] sm:$0xff]
    %v86 = vld [vmem:[%s1 + $0x1b8] sm:$0xff]
    %v87 = vld [vmem:[%s1 + $0x1c0] sm:$0xff]
    %v88 = vld [vmem:[%s1 + $0x1c8] sm:$0xff]
    %v89 = vld [vmem:[%s1 + $0x1d0] sm:$0xff]
    %v90 = vld [vmem:[%s1 + $0x1d8] sm:$0xff]
    %v91 = vld [vmem:[%s1 + $0x1e0] sm:$0xff]
    %v92 = vld [vmem:[%s1 + $0x1e8] sm:$0xff]
    %v93 = vld [vmem:[%s1 + $0x1f0] sm:$0xff]
    %v94 = vld [vmem:[%s1 + $0x1f8] sm:$0xff]
    %v95 = vld [vmem:[%s1 + $0x200] sm:$0xff]
    %v96 = vld [vmem:[%s1 + $0x208] sm:$0xff]
    %v97 = vld [vmem:[%s1 + $0x210] sm:$0xff]
    %v98 = vld [vmem:[%s1 + $0x218] sm:$0xff]
    %v99 = vld [vmem:[%s1 + $0x220] sm:$0xff]
    %v100 = vld [vmem:[%s1 + $0x228] sm:$0xff]
    %v101 = vld [vmem:[%s1 + $0x230] sm:$0xff]
    %v102 = vld [vmem:[%s1 + $0x238] sm:$0xff]
    %v103 = vld [vmem:[%s1 + $0x240] sm:$0xff]
    %v104 = vld [vmem:[%s1 + $0x248] sm:$0xff]
    %v105 = vld [vmem:[%s1 + $0x250] sm:$0xff]
    %v106 = vld [vmem:[%s1 + $0x258] sm:$0xff]
    %v107 = vld [vmem:[%s1 + $0x260] sm:$0xff]
    %v108 = vld [vmem:[%s1 + $0x268] sm:$0xff]
    %v109 = vld [vmem:[%s1 + $0x270] sm:$0xff]
    %v110 = vld [vmem:[%s1 + $0x278] sm:$0xff]
    %v111 = vld [vmem:[%s1 + $0x280] sm:$0xff]
    %v112 = vld [vmem:[%s1 + $0x288] sm:$0xff]
    %v113 = vld [vmem:[%s1 + $0x290] sm:$0xff]
    %v114 = vld [vmem:[%s1 + $0x298] sm:$0xff]
    %v115 = vld [vmem:[%s1 + $0x2a0] sm:$0xff]
    %v116 = vld [vmem:[%s1 + $0x2a8] sm:$0xff]
    %v117 = vld [vmem:[%s1 + $0x2b0] sm:$0xff]
    %v118 = vld [vmem:[%s1 + $0x2b8] sm:$0xff]
    %v119 = vld [vmem:[%s1 + $0x2c0] sm:$0xff]
    %v120 = vld [vmem:[%s1 + $0x2c8] sm:$0xff]
    %v121 = vld [vmem:[%s1 + $0x2d0] sm:$0xff]
    %v122 = vld [vmem:[%s1 + $0x2d8] sm:$0xff]
    %v123 = vld [vmem:[%s1 + $0x2e0] sm:$0xff]
    %v124 = vld [vmem:[%s1 + $0x2e8] sm:$0xff]
    %v125 = vld [vmem:[%s1 + $0x2f0] sm:$0xff]
    %v126 = vld [vmem:[%s1 + $0x2f8] sm:$0xff]
    %v127 = vld [vmem:[%s1 + $0x300] sm:$0xff]
    %v128 = vld [vmem:[%s1 + $0x308] sm:$0xff]
    %v129 = vld [vmem:[%s1 + $0x310] sm:$0xff]
    %v130 = vld [vmem:[%s1 + $0x318] sm:$0xff]
    %v131 = vld [vmem:[%s1 + $0x320] sm:$0xff]
    %v132 = vld [vmem:[%s1 + $0x328] sm:$0xff]
    %v133 = vld [vmem:[%s1 + $0x330] sm:$0xff]
    %v134 = vld [vmem:[%s1 + $0x338] sm:$0xff]
    %v135 = vld [vmem:[%s1 + $0x340] sm:$0xff]
    %v136 = vld [vmem:[%s1 + $0x348] sm:$0xff]
    %v137 = vld [vmem:[%s1 + $0x350] sm:$0xff]
    %v138 = vld [vmem:[%s1 + $0x358] sm:$0xff]
    %v139 = vld [vmem:[%s1 + $0x360] sm:$0xff]
    %v140 = vld [vmem:[%s1 + $0x368] sm:$0xff]
    %v141 = vld [vmem:[%s1 + $0x370] sm:$0xff]
    %v142 = vld [vmem:[%s1 + $0x378] sm:$0xff]
    %v143 = vld [vmem:[%s1 + $0x380] sm:$0xff]
    %v144 = vld [vmem:[%s1 + $0x388] sm:$0xff]
    %v145 = vld [vmem:[%s1 + $0x390] sm:$0xff]
    %v146 = vld [vmem:[%s1 + $0x398] sm:$0xff]
    %v147 = vld [vmem:[%s1 + $0x3a0] sm:$0xff]
    %v148 = vld [vmem:[%s1 + $0x3a8] sm:$0xff]
    %v149 = vld [vmem:[%s1 + $0x3b0] sm:$0xff]
    %v150 = vld [vmem:[%s1 + $0x3b8] sm:$0xff]
    %v151 = vld [vmem:[%s1 + $0x3c0] sm:$0xff]
    %v152 = vld [vmem:[%s1 + $0x3c8] sm:$0xff]
    %v153 = vld [vmem:[%s1 + $0x3d0] sm:$0xff]
    %v154 = vld [vmem:[%s1 + $0x3d8] sm:$0xff]
    %v155 = vld [vmem:[%s1 + $0x3e0] sm:$0xff]
    %v156 = vld [vmem:[%s1 + $0x3e8] sm:$0xff]
    %v157 = vld [vmem:[%s1 + $0x3f0] sm:$0xff]
    %v158 = vld [vmem:[%s1 + $0x3f8] sm:$0xff]
    %v159 = vld [vmem:[%s1 + $0x400] sm:$0xff]
    %v160 = vld [vmem:[%s1 + $0x408] sm:$0xff]
    %v161 = vld [vmem:[%s1 + $0x410] sm:$0xff]
    %v162 = vld [vmem:[%s1 + $0x418] sm:$0xff]
    %v163 = vld [vmem:[%s1 + $0x420] sm:$0xff]
    %v164 = vld [vmem:[%s1 + $0x428] sm:$0xff]
    %v165 = vld [vmem:[%s1 + $0x430] sm:$0xff]
    %v166 = vld [vmem:[%s1 + $0x438] sm:$0xff]
    %v167 = vld [vmem:[%s1 + $0x440] sm:$0xff]
    %v168 = vld [vmem:[%s1 + $0x448] sm:$0xff]
    %v169 = vld [vmem:[%s1 + $0x450] sm:$0xff]
    %v170 = vld [vmem:[%s1 + $0x458] sm:$0xff]
    %v171 = vld [vmem:[%s1 + $0x460] sm:$0xff]
    %v172 = vld [vmem:[%s1 + $0x468] sm:$0xff]
    %v173 = vld [vmem:[%s1 + $0x470] sm:$0xff]
    %v174 = vld [vmem:[%s1 + $0x478] sm:$0xff]
    %v175 = vld [vmem:[%s1 + $0x480] sm:$0xff]
    %v176 = vld [vmem:[%s1 + $0x488] sm:$0xff]
    %v177 = vld [vmem:[%s1 + $0x490] sm:$0xff]
    %v178 = vld [vmem:[%s1 + $0x498] sm:$0xff]
    %v179 = vld [vmem:[%s1 + $0x4a0] sm:$0xff]
    %v180 = vld [vmem:[%s1 + $0x4a8] sm:$0xff]
    %v181 = vld [vmem:[%s1 + $0x4b0] sm:$0xff]
    %v182 = vld [vmem:[%s1 + $0x4b8] sm:$0xff]
    %v183 = vld [vmem:[%s1 + $0x4c0] sm:$0xff]
    %v184 = vld [vmem:[%s1 + $0x4c8] sm:$0xff]
    %v185 = vld [vmem:[%s1 + $0x4d0] sm:$0xff]
    %v186 = vld [vmem:[%s1 + $0x4d8] sm:$0xff]
    %v187 = vld [vmem:[%s1 + $0x4e0] sm:$0xff]
    %v188 = vld [vmem:[%s1 + $0x4e8] sm:$0xff]
    %v189 = vld [vmem:[%s1 + $0x4f0] sm:$0xff]
    %v190 = vld [vmem:[%s1 + $0x4f8] sm:$0xff]
    %v191 = vld [vmem:[%s1 + $0x500] sm:$0xff]
    %v192 = vld [vmem:[%s1 + $0x508] sm:$0xff]
    %v193 = vld [vmem:[%s1 + $0x510] sm:$0xff]
    %v194 = vld [vmem:[%s1 + $0x518] sm:$0xff]
    %v195 = vld [vmem:[%s1 + $0x520] sm:$0xff]
    %v196 = vld [vmem:[%s1 + $0x528] sm:$0xff]
    %v197 = vld [vmem:[%s1 + $0x530] sm:$0xff]
    %v198 = vld [vmem:[%s1 + $0x538] sm:$0xff]
    %v199 = vld [vmem:[%s1 + $0x540] sm:$0xff]
    %v200 = vld [vmem:[%s1 + $0x548] sm:$0xff]
    %v201 = vld [vmem:[%s1 + $0x550] sm:$0xff]
    %v202 = vld [vmem:[%s1 + $0x558] sm:$0xff]
    %v203 = vld [vmem:[%s1 + $0x560] sm:$0xff]
    %v204 = vld [vmem:[%s1 + $0x568] sm:$0xff]
    %v205 = vld [vmem:[%s1 + $0x570] sm:$0xff]
    %v206 = vld [vmem:[%s1 + $0x578] sm:$0xff]
    %v207 = vld [vmem:[%s1 + $0x580] sm:$0xff]
    %v208 = vld [vmem:[%s1 + $0x588] sm:$0xff]
    %v209 = vld [vmem:[%s1 + $0x590] sm:$0xff]
    %v210 = vld [vmem:[%s1 + $0x598] sm:$0xff]
    %v211 = vld [vmem:[%s1 + $0x5a0] sm:$0xff]
    %v212 = vld [vmem:[%s1 + $0x5a8] sm:$0xff]
    %v213 = vld [vmem:[%s1 + $0x5b0] sm:$0xff]
    %v214 = vld [vmem:[%s1 + $0x5b8] sm:$0xff]
    %v215 = vld [vmem:[%s1 + $0x5c0] sm:$0xff]
    %v216 = vld [vmem:[%s1 + $0x5c8] sm:$0xff]
    %v217 = vld [vmem:[%s1 + $0x5d0] sm:$0xff]
    %v218 = vld [vmem:[%s1 + $0x5d8] sm:$0xff]
    %v219 = vld [vmem:[%s1 + $0x5e0] sm:$0xff]
    %v220 = vld [vmem:[%s1 + $0x5e8] sm:$0xff]
    %v221 = vld [vmem:[%s1 + $0x5f0] sm:$0xff]
    %v222 = vld [vmem:[%s1 + $0x5f8] sm:$0xff]
    %v223 = vld [vmem:[%s1 + $0x600] sm:$0xff]
    %v224 = vld [vmem:[%s1 + $0x608] sm:$0xff]
    %v225 = vld [vmem:[%s1 + $0x610] sm:$0xff]
    %v226 = vld [vmem:[%s1 + $0x618] sm:$0xff]
    %v227 = vld [vmem:[%s1 + $0x620] sm:$0xff]
    %v228 = vld [vmem:[%s1 + $0x628] sm:$0xff]
    %v229 = vld [vmem:[%s1 + $0x630] sm:$0xff]
    %v230 = vld [vmem:[%s1 + $0x638] sm:$0xff]
    %v231 = vld [vmem:[%s1 + $0x640] sm:$0xff]
    %v232 = vld [vmem:[%s1 + $0x648] sm:$0xff]
    %v233 = vld [vmem:[%s1 + $0x650] sm:$0xff]
    %v234 = vld [vmem:[%s1 + $0x658] sm:$0xff]
    %v235 = vld [vmem:[%s1 + $0x660] sm:$0xff]
    %v236 = vld [vmem:[%s1 + $0x668] sm:$0xff]
    %v237 = vld [vmem:[%s1 + $0x670] sm:$0xff]
    %v238 = vld [vmem:[%s1 + $0x678] sm:$0xff]
    %v239 = vld [vmem:[%s1 + $0x680] sm:$0xff]
    %v240 = vld [vmem:[%s1 + $0x688] sm:$0xff]
    %v241 = vld [vmem:[%s1 + $0x690] sm:$0xff]
    %v242 = vld [vmem:[%s1 + $0x698] sm:$0xff]
    %v243 = vld [vmem:[%s1 + $0x6a0] sm:$0xff]
    %v244 = vld [vmem:[%s1 + $0x6a8] sm:$0xff]
    %v245 = vld [vmem:[%s1 + $0x6b0] sm:$0xff]
    %v246 = vld [vmem:[%s1 + $0x6b8] sm:$0xff]
    %v247 = vld [vmem:[%s1 + $0x6c0] sm:$0xff]
    %v248 = vld [vmem:[%s1 + $0x6c8] sm:$0xff]
    %v249 = vld [vmem:[%s1 + $0x6d0] sm:$0xff]
    %v250 = vld [vmem:[%s1 + $0x6d8] sm:$0xff]
    %v251 = vld [vmem:[%s1 + $0x6e0] sm:$0xff]
    %v252 = vld [vmem:[%s1 + $0x6e8] sm:$0xff]
    %v253 = vld [vmem:[%s1 + $0x6f0] sm:$0xff]
    %v254 = vld [vmem:[%s1 + $0x6f8] sm:$0xff]
    %v255 = vld [vmem:[%s1 + $0x700] sm:$0xff]
    %v256 = vld [vmem:[%s1 + $0x708] sm:$0xff]
    %v257 = vld [vmem:[%s1 + $0x710] sm:$0xff]
    %v258 = vld [vmem:[%s1 + $0x718] sm:$0xff]
    %v259 = vld [vmem:[%s1 + $0x720] sm:$0xff]
    %v260 = vld [vmem:[%s1 + $0x728] sm:$0xff]
    %v261 = vld [vmem:[%s1 + $0x730] sm:$0xff]
    %v262 = vld [vmem:[%s1 + $0x738] sm:$0xff]
    %v263 = vld [vmem:[%s1 + $0x740] sm:$0xff]
    %v264 = vld [vmem:[%s1 + $0x748] sm:$0xff]
    %v265 = vld [vmem:[%s1 + $0x750] sm:$0xff]
    %v266 = vld [vmem:[%s1 + $0x758] sm:$0xff]
    %v267 = vld [vmem:[%s1 + $0x760] sm:$0xff]
    %v268 = vld [vmem:[%s1 + $0x768] sm:$0xff]
    %v269 = vld [vmem:[%s1 + $0x770] sm:$0xff]
    %v270 = vld [vmem:[%s1 + $0x778] sm:$0xff]
    %v271 = vld [vmem:[%s1 + $0x780] sm:$0xff]
    %v272 = vld [vmem:[%s1 + $0x788] sm:$0xff]
    %v273 = vld [vmem:[%s1 + $0x790] sm:$0xff]
    %v274 = vld [vmem:[%s1 + $0x798] sm:$0xff]
    %v275 = vld [vmem:[%s1 + $0x7a0] sm:$0xff]
    %v276 = vld [vmem:[%s1 + $0x7a8] sm:$0xff]
    %v277 = vld [vmem:[%s1 + $0x7b0] sm:$0xff]
    %v278 = vld [vmem:[%s1 + $0x7b8] sm:$0xff]
    %v279 = vld [vmem:[%s1 + $0x7c0] sm:$0xff]
    %v280 = vld [vmem:[%s1 + $0x7c8] sm:$0xff]
    %v281 = vld [vmem:[%s1 + $0x7d0] sm:$0xff]
    %v282 = vld [vmem:[%s1 + $0x7d8] sm:$0xff]
    %v283 = vld [vmem:[%s1 + $0x7e0] sm:$0xff]
    %v284 = vld [vmem:[%s1 + $0x7e8] sm:$0xff]
    %v285 = vld [vmem:[%s1 + $0x7f0] sm:$0xff]
    %v286 = vld [vmem:[%s1 + $0x7f8] sm:$0xff]
    %v287 = vld [vmem:[%s1 + $0x800] sm:$0xff]
    %v288 = vld [vmem:[%s1 + $0x808] sm:$0xff]
    %v289 = vld [vmem:[%s1 + $0x810] sm:$0xff]
    %v290 = vld [vmem:[%s1 + $0x818] sm:$0xff]
    %v291 = vld [vmem:[%s1 + $0x820] sm:$0xff]
    %v292 = vld [vmem:[%s1 + $0x828] sm:$0xff]
    %v293 = vld [vmem:[%s1 + $0x830] sm:$0xff]
    %v294 = vld [vmem:[%s1 + $0x838] sm:$0xff]
    %v295 = vld [vmem:[%s1 + $0x840] sm:$0xff]
    %v296 = vld [vmem:[%s1 + $0x848] sm:$0xff]
    %v297 = vld [vmem:[%s1 + $0x850] sm:$0xff]
    %v298 = vld [vmem:[%s1 + $0x858] sm:$0xff]
    %v299 = vld [vmem:[%s1 + $0x860] sm:$0xff]
    %v300 = vld [vmem:[%s1 + $0x868] sm:$0xff]
    %v301 = vld [vmem:[%s1 + $0x870] sm:$0xff]
    %v302 = vld [vmem:[%s1 + $0x878] sm:$0xff]
    %v303 = vld [vmem:[%s1 + $0x880] sm:$0xff]
    %v304 = vld [vmem:[%s1 + $0x888] sm:$0xff]
    %v305 = vld [vmem:[%s1 + $0x890] sm:$0xff]
    %v306 = vld [vmem:[%s1 + $0x898] sm:$0xff]
    %v307 = vld [vmem:[%s1 + $0x8a0] sm:$0xff]
    %v308 = vld [vmem:[%s1 + $0x8a8] sm:$0xff]
    %v309 = vld [vmem:[%s1 + $0x8b0] sm:$0xff]
    %v310 = vld [vmem:[%s1 + $0x8b8] sm:$0xff]
    %v311 = vld [vmem:[%s1 + $0x8c0] sm:$0xff]
    %v312 = vld [vmem:[%s1 + $0x8c8] sm:$0xff]
    %v313 = vld [vmem:[%s1 + $0x8d0] sm:$0xff]
    %v314 = vld [vmem:[%s1 + $0x8d8] sm:$0xff]
    %v315 = vld [vmem:[%s1 + $0x8e0] sm:$0xff]
    %v316 = vld [vmem:[%s1 + $0x8e8] sm:$0xff]
    %v317 = vld [vmem:[%s1 + $0x8f0] sm:$0xff]
    %v318 = vld [vmem:[%s1 + $0x8f8] sm:$0xff]
    %v319 = vld [vmem:[%s1 + $0x900] sm:$0xff]
    %v320 = vld [vmem:[%s1 + $0x908] sm:$0xff]
    %v321 = vld [vmem:[%s1 + $0x910] sm:$0xff]
    %v322 = vld [vmem:[%s1 + $0x918] sm:$0xff]
    %v323 = vld [vmem:[%s1 + $0x920] sm:$0xff]
    %v324 = vld [vmem:[%s1 + $0x928] sm:$0xff]
    %v325 = vld [vmem:[%s1 + $0x930] sm:$0xff]
    %v326 = vld [vmem:[%s1 + $0x938] sm:$0xff]
    %v327 = vld [vmem:[%s1 + $0x940] sm:$0xff]
    %v328 = vld [vmem:[%s1 + $0x948] sm:$0xff]
    %v329 = vld [vmem:[%s1 + $0x950] sm:$0xff]
    %v330 = vld [vmem:[%s1 + $0x958] sm:$0xff]
    %v331 = vld [vmem:[%s1 + $0x960] sm:$0xff]
    %v332 = vld [vmem:[%s1 + $0x968] sm:$0xff]
    %v333 = vld [vmem:[%s1 + $0x970] sm:$0xff]
    %v334 = vld [vmem:[%s1 + $0x978] sm:$0xff]
    %v335 = vld [vmem:[%s1 + $0x980] sm:$0xff]
    %v336 = vld [vmem:[%s1 + $0x988] sm:$0xff]
    %v337 = vld [vmem:[%s1 + $0x990] sm:$0xff]
    %v338 = vld [vmem:[%s1 + $0x998] sm:$0xff]
    %v339 = vld [vmem:[%s1 + $0x9a0] sm:$0xff]
    %v340 = vld [vmem:[%s1 + $0x9a8] sm:$0xff]
    %v341 = vld [vmem:[%s1 + $0x9b0] sm:$0xff]
    %v342 = vld [vmem:[%s1 + $0x9b8] sm:$0xff]
    %v343 = vld [vmem:[%s1 + $0x9c0] sm:$0xff]
    %v344 = vld [vmem:[%s1 + $0x9c8] sm:$0xff]
    %v345 = vld [vmem:[%s1 + $0x9d0] sm:$0xff]
    %v346 = vld [vmem:[%s1 + $0x9d8] sm:$0xff]
    %v347 = vld [vmem:[%s1 + $0x9e0] sm:$0xff]
    %v348 = vld [vmem:[%s1 + $0x9e8] sm:$0xff]
    %v349 = vld [vmem:[%s1 + $0x9f0] sm:$0xff]
    %v350 = vld [vmem:[%s1 + $0x9f8] sm:$0xff]
    %v351 = vld [vmem:[%s1 + $0xa00] sm:$0xff]
    %v352 = vld [vmem:[%s1 + $0xa08] sm:$0xff]
    %v353 = vld [vmem:[%s1 + $0xa10] sm:$0xff]
    %v354 = vld [vmem:[%s1 + $0xa18] sm:$0xff]
    %v355 = vld [vmem:[%s1 + $0xa20] sm:$0xff]
    %v356 = vld [vmem:[%s1 + $0xa28] sm:$0xff]
    %v357 = vld [vmem:[%s1 + $0xa30] sm:$0xff]
    %v358 = vld [vmem:[%s1 + $0xa38] sm:$0xff]
    %v359 = vld [vmem:[%s1 + $0xa40] sm:$0xff]
    %v360 = vld [vmem:[%s1 + $0xa48] sm:$0xff]
    %v361 = vld [vmem:[%s1 + $0xa50] sm:$0xff]
    %v362 = vld [vmem:[%s1 + $0xa58] sm:$0xff]
    %v363 = vld [vmem:[%s1 + $0xa60] sm:$0xff]
    %v364 = vld [vmem:[%s1 + $0xa68] sm:$0xff]
    %v365 = vld [vmem:[%s1 + $0xa70] sm:$0xff]
    %v366 = vld [vmem:[%s1 + $0xa78] sm:$0xff]
    %v367 = vld [vmem:[%s1 + $0xa80] sm:$0xff]
    %v368 = vld [vmem:[%s1 + $0xa88] sm:$0xff]
    %v369 = vld [vmem:[%s1 + $0xa90] sm:$0xff]
    %v370 = vld [vmem:[%s1 + $0xa98] sm:$0xff]
    %v371 = vld [vmem:[%s1 + $0xaa0] sm:$0xff]
    %v372 = vld [vmem:[%s1 + $0xaa8] sm:$0xff]
    %v373 = vld [vmem:[%s1 + $0xab0] sm:$0xff]
    %v374 = vld [vmem:[%s1 + $0xab8] sm:$0xff]
    %v375 = vld [vmem:[%s1 + $0xac0] sm:$0xff]
    %v376 = vld [vmem:[%s1 + $0xac8] sm:$0xff]
    %v377 = vld [vmem:[%s1 + $0xad0] sm:$0xff]
    %v378 = vld [vmem:[%s1 + $0xad8] sm:$0xff]
    %v379 = vld [vmem:[%s1 + $0xae0] sm:$0xff]
    %v380 = vld [vmem:[%s1 + $0xae8] sm:$0xff]
    %v381 = vld [vmem:[%s1 + $0xaf0] sm:$0xff]
    %v382 = vld [vmem:[%s1 + $0xaf8] sm:$0xff]
    %v383 = vld [vmem:[%s1 + $0xb00] sm:$0xff]
    %v384 = vld [vmem:[%s1 + $0xb08] sm:$0xff]
    %v385 = vld [vmem:[%s1 + $0xb10] sm:$0xff]
    %v386 = vld [vmem:[%s1 + $0xb18] sm:$0xff]
    %v387 = vld [vmem:[%s1 + $0xb20] sm:$0xff]
    %v388 = vld [vmem:[%s1 + $0xb28] sm:$0xff]
    %v389 = vld [vmem:[%s1 + $0xb30] sm:$0xff]
    %v390 = vld [vmem:[%s1 + $0xb38] sm:$0xff]
    %v391 = vld [vmem:[%s1 + $0xb40] sm:$0xff]
    %v392 = vld [vmem:[%s1 + $0xb48] sm:$0xff]
    %v393 = vld [vmem:[%s1 + $0xb50] sm:$0xff]
    %v394 = vld [vmem:[%s1 + $0xb58] sm:$0xff]
    %v395 = vld [vmem:[%s1 + $0xb60] sm:$0xff]
    %v396 = vld [vmem:[%s1 + $0xb68] sm:$0xff]
    %v397 = vld [vmem:[%s1 + $0xb70] sm:$0xff]
    %v398 = vld [vmem:[%s1 + $0xb78] sm:$0xff]
    %v399 = vld [vmem:[%s1 + $0xb80] sm:$0xff]
    %v400 = vld [vmem:[%s1 + $0xb88] sm:$0xff]
    %v401 = vld [vmem:[%s1 + $0xb90] sm:$0xff]
    %v402 = vld [vmem:[%s1 + $0xb98] sm:$0xff]
    %v403 = vld [vmem:[%s1 + $0xba0] sm:$0xff]
    %v404 = vld [vmem:[%s1 + $0xba8] sm:$0xff]
    %v405 = vld [vmem:[%s1 + $0xbb0] sm:$0xff]
    %v406 = vld [vmem:[%s1 + $0xbb8] sm:$0xff]
    %v407 = vld [vmem:[%s1 + $0xbc0] sm:$0xff]
    %v408 = vld [vmem:[%s1 + $0xbc8] sm:$0xff]
    %v409 = vld [vmem:[%s1 + $0xbd0] sm:$0xff]
    %v410 = vld [vmem:[%s1 + $0xbd8] sm:$0xff]
    %v411 = vld [vmem:[%s1 + $0xbe0] sm:$0xff]
    %v412 = vld [vmem:[%s1 + $0xbe8] sm:$0xff]
    %v413 = vld [vmem:[%s1 + $0xbf0] sm:$0xff]
    %v414 = vld [vmem:[%s1 + $0xbf8] sm:$0xff]
    %v416 = vperm.slane %v21, 0
    %v417 = vperm.slane %v21, 1
    %v418 = vperm.slane %v21, 2
    %v419 = vperm.slane %v21, 3
    %424 = vmatpush.msra.mxu0 %v91
    %425 = vmatpush.msra.mxu0 %v87
    %426 = vmatpush.msra.mxu0 %v83
    %427 = vmatpush.msra.mxu0 %v79
    %428 = vmatpush.msra.mxu0 %v75
    %429 = vmatpush.msra.mxu0 %v71
    %430 = vmatpush.msra.mxu0 %v67
    %431 = vmatpush.msra.mxu0 %v63
    %432 = vmatpush.msra.mxu0 %v59
    %433 = vmatpush.msra.mxu0 %v55
    %434 = vmatpush.msra.mxu0 %v51
    %435 = vmatpush.msra.mxu0 %v47
    %436 = vmatpush.msra.mxu0 %v43
    %437 = vmatpush.msra.mxu0 %v39
    %438 = vmatpush.msra.mxu0 %v35
    %439 = vmatpush.msra.mxu0 %v31
    %440 = vmatmul.f32.gmra.mxu0 %v25
    %v441 = vpop.f32.mrf.mxu0
    %v442 = vadd.f32 %v416, %v441
    %443 = vdwg.mxu0
    %444 = vmatpush.msra.mxu0 %v155
    %445 = vmatpush.msra.mxu0 %v151
    %446 = vmatpush.msra.mxu0 %v147
    %447 = vmatpush.msra.mxu0 %v143
    %448 = vmatpush.msra.mxu0 %v139
    %449 = vmatpush.msra.mxu0 %v135
    %450 = vmatpush.msra.mxu0 %v131
    %451 = vmatpush.msra.mxu0 %v127
    %452 = vmatpush.msra.mxu0 %v123
    %453 = vmatpush.msra.mxu0 %v119
    %454 = vmatpush.msra.mxu0 %v115
    %455 = vmatpush.msra.mxu0 %v111
    %456 = vmatpush.msra.mxu0 %v107
    %457 = vmatpush.msra.mxu0 %v103
    %458 = vmatpush.msra.mxu0 %v99
    %459 = vmatpush.msra.mxu0 %v95
    %460 = vmatmul.f32.gmra.mxu0 %v26
    %v461 = vpop.f32.mrf.mxu0
    %v462 = vadd.f32 %v442, %v461
    %463 = vdwg.mxu0
    %464 = vmatpush.msra.mxu0 %v219
    %465 = vmatpush.msra.mxu0 %v215
    %466 = vmatpush.msra.mxu0 %v211
    %467 = vmatpush.msra.mxu0 %v207
    %468 = vmatpush.msra.mxu0 %v203
    %469 = vmatpush.msra.mxu0 %v199
    %470 = vmatpush.msra.mxu0 %v195
    %471 = vmatpush.msra.mxu0 %v191
    %472 = vmatpush.msra.mxu0 %v187
    %473 = vmatpush.msra.mxu0 %v183
    %474 = vmatpush.msra.mxu0 %v179
    %475 = vmatpush.msra.mxu0 %v175
    %476 = vmatpush.msra.mxu0 %v171
    %477 = vmatpush.msra.mxu0 %v167
    %478 = vmatpush.msra.mxu0 %v163
    %479 = vmatpush.msra.mxu0 %v159
    %480 = vmatmul.f32.gmra.mxu0 %v27
    %v481 = vpop.f32.mrf.mxu0
    %v482 = vadd.f32 %v462, %v481
    %483 = vdwg.mxu0
    %484 = vmatpush.msra.mxu0 %v283
    %485 = vmatpush.msra.mxu0 %v279
    %486 = vmatpush.msra.mxu0 %v275
    %487 = vmatpush.msra.mxu0 %v271
    %488 = vmatpush.msra.mxu0 %v267
    %489 = vmatpush.msra.mxu0 %v263
    %490 = vmatpush.msra.mxu0 %v259
    %491 = vmatpush.msra.mxu0 %v255
    %492 = vmatpush.msra.mxu0 %v251
    %493 = vmatpush.msra.mxu0 %v247
    %494 = vmatpush.msra.mxu0 %v243
    %495 = vmatpush.msra.mxu0 %v239
    %496 = vmatpush.msra.mxu0 %v235
    %497 = vmatpush.msra.mxu0 %v231
    %498 = vmatpush.msra.mxu0 %v227
    %499 = vmatpush.msra.mxu0 %v223
    %500 = vmatmul.f32.gmra.mxu0 %v28
    %v501 = vpop.f32.mrf.mxu0
    %v502 = vadd.f32 %v482, %v501
    %503 = vdwg.mxu0
    %504 = vmatpush.msra.mxu0 %v347
    %505 = vmatpush.msra.mxu0 %v343
    %506 = vmatpush.msra.mxu0 %v339
    %507 = vmatpush.msra.mxu0 %v335
    %508 = vmatpush.msra.mxu0 %v331
    %509 = vmatpush.msra.mxu0 %v327
    %510 = vmatpush.msra.mxu0 %v323
    %511 = vmatpush.msra.mxu0 %v319
    %512 = vmatpush.msra.mxu0 %v315
    %513 = vmatpush.msra.mxu0 %v311
    %514 = vmatpush.msra.mxu0 %v307
    %515 = vmatpush.msra.mxu0 %v303
    %516 = vmatpush.msra.mxu0 %v299
    %517 = vmatpush.msra.mxu0 %v295
    %518 = vmatpush.msra.mxu0 %v291
    %519 = vmatpush.msra.mxu0 %v287
    %520 = vmatmul.f32.gmra.mxu0 %v29
    %v521 = vpop.f32.mrf.mxu0
    %v522 = vadd.f32 %v502, %v521
    %523 = vdwg.mxu0
    %524 = vmatpush.msra.mxu0 %v411
    %525 = vmatpush.msra.mxu0 %v407
    %526 = vmatpush.msra.mxu0 %v403
    %527 = vmatpush.msra.mxu0 %v399
    %528 = vmatpush.msra.mxu0 %v395
    %529 = vmatpush.msra.mxu0 %v391
    %530 = vmatpush.msra.mxu0 %v387
    %531 = vmatpush.msra.mxu0 %v383
    %532 = vmatpush.msra.mxu0 %v379
    %533 = vmatpush.msra.mxu0 %v375
    %534 = vmatpush.msra.mxu0 %v371
    %535 = vmatpush.msra.mxu0 %v367
    %536 = vmatpush.msra.mxu0 %v363
    %537 = vmatpush.msra.mxu0 %v359
    %538 = vmatpush.msra.mxu0 %v355
    %539 = vmatpush.msra.mxu0 %v351
    %540 = vmatmul.f32.gmra.mxu0 %v30
    %v541 = vpop.f32.mrf.mxu0
    %v542 = vadd.f32 %v522, %v541
    %543 = vdwg.mxu0
    %544 = vmatpush.msra.mxu0 %v92
    %545 = vmatpush.msra.mxu0 %v88
    %546 = vmatpush.msra.mxu0 %v84
    %547 = vmatpush.msra.mxu0 %v80
    %548 = vmatpush.msra.mxu0 %v76
    %549 = vmatpush.msra.mxu0 %v72
    %550 = vmatpush.msra.mxu0 %v68
    %551 = vmatpush.msra.mxu0 %v64
    %552 = vmatpush.msra.mxu0 %v60
    %553 = vmatpush.msra.mxu0 %v56
    %554 = vmatpush.msra.mxu0 %v52
    %555 = vmatpush.msra.mxu0 %v48
    %556 = vmatpush.msra.mxu0 %v44
    %557 = vmatpush.msra.mxu0 %v40
    %558 = vmatpush.msra.mxu0 %v36
    %559 = vmatpush.msra.mxu0 %v32
    %560 = vmatmul.f32.gmra.mxu0 %v25
    %v561 = vpop.f32.mrf.mxu0
    %v562 = vadd.f32 %v417, %v561
    %563 = vdwg.mxu0
    %564 = vmatpush.msra.mxu0 %v156
    %565 = vmatpush.msra.mxu0 %v152
    %566 = vmatpush.msra.mxu0 %v148
    %567 = vmatpush.msra.mxu0 %v144
    %568 = vmatpush.msra.mxu0 %v140
    %569 = vmatpush.msra.mxu0 %v136
    %570 = vmatpush.msra.mxu0 %v132
    %571 = vmatpush.msra.mxu0 %v128
    %572 = vmatpush.msra.mxu0 %v124
    %573 = vmatpush.msra.mxu0 %v120
    %574 = vmatpush.msra.mxu0 %v116
    %575 = vmatpush.msra.mxu0 %v112
    %576 = vmatpush.msra.mxu0 %v108
    %577 = vmatpush.msra.mxu0 %v104
    %578 = vmatpush.msra.mxu0 %v100
    %579 = vmatpush.msra.mxu0 %v96
    %580 = vmatmul.f32.gmra.mxu0 %v26
    %v581 = vpop.f32.mrf.mxu0
    %v582 = vadd.f32 %v562, %v581
    %583 = vdwg.mxu0
    %584 = vmatpush.msra.mxu0 %v220
    %585 = vmatpush.msra.mxu0 %v216
    %586 = vmatpush.msra.mxu0 %v212
    %587 = vmatpush.msra.mxu0 %v208
    %588 = vmatpush.msra.mxu0 %v204
    %589 = vmatpush.msra.mxu0 %v200
    %590 = vmatpush.msra.mxu0 %v196
    %591 = vmatpush.msra.mxu0 %v192
    %592 = vmatpush.msra.mxu0 %v188
    %593 = vmatpush.msra.mxu0 %v184
    %594 = vmatpush.msra.mxu0 %v180
    %595 = vmatpush.msra.mxu0 %v176
    %596 = vmatpush.msra.mxu0 %v172
    %597 = vmatpush.msra.mxu0 %v168
    %598 = vmatpush.msra.mxu0 %v164
    %599 = vmatpush.msra.mxu0 %v160
    %600 = vmatmul.f32.gmra.mxu0 %v27
    %v601 = vpop.f32.mrf.mxu0
    %v602 = vadd.f32 %v582, %v601
    %603 = vdwg.mxu0
    %604 = vmatpush.msra.mxu0 %v284
    %605 = vmatpush.msra.mxu0 %v280
    %606 = vmatpush.msra.mxu0 %v276
    %607 = vmatpush.msra.mxu0 %v272
    %608 = vmatpush.msra.mxu0 %v268
    %609 = vmatpush.msra.mxu0 %v264
    %610 = vmatpush.msra.mxu0 %v260
    %611 = vmatpush.msra.mxu0 %v256
    %612 = vmatpush.msra.mxu0 %v252
    %613 = vmatpush.msra.mxu0 %v248
    %614 = vmatpush.msra.mxu0 %v244
    %615 = vmatpush.msra.mxu0 %v240
    %616 = vmatpush.msra.mxu0 %v236
    %617 = vmatpush.msra.mxu0 %v232
    %618 = vmatpush.msra.mxu0 %v228
    %619 = vmatpush.msra.mxu0 %v224
    %620 = vmatmul.f32.gmra.mxu0 %v28
    %v621 = vpop.f32.mrf.mxu0
    %v622 = vadd.f32 %v602, %v621
    %623 = vdwg.mxu0
    %624 = vmatpush.msra.mxu0 %v348
    %625 = vmatpush.msra.mxu0 %v344
    %626 = vmatpush.msra.mxu0 %v340
    %627 = vmatpush.msra.mxu0 %v336
    %628 = vmatpush.msra.mxu0 %v332
    %629 = vmatpush.msra.mxu0 %v328
    %630 = vmatpush.msra.mxu0 %v324
    %631 = vmatpush.msra.mxu0 %v320
    %632 = vmatpush.msra.mxu0 %v316
    %633 = vmatpush.msra.mxu0 %v312
    %634 = vmatpush.msra.mxu0 %v308
    %635 = vmatpush.msra.mxu0 %v304
    %636 = vmatpush.msra.mxu0 %v300
    %637 = vmatpush.msra.mxu0 %v296
    %638 = vmatpush.msra.mxu0 %v292
    %639 = vmatpush.msra.mxu0 %v288
    %640 = vmatmul.f32.gmra.mxu0 %v29
    %v641 = vpop.f32.mrf.mxu0
    %v642 = vadd.f32 %v622, %v641
    %643 = vdwg.mxu0
    %644 = vmatpush.msra.mxu0 %v412
    %645 = vmatpush.msra.mxu0 %v408
    %646 = vmatpush.msra.mxu0 %v404
    %647 = vmatpush.msra.mxu0 %v400
    %648 = vmatpush.msra.mxu0 %v396
    %649 = vmatpush.msra.mxu0 %v392
    %650 = vmatpush.msra.mxu0 %v388
    %651 = vmatpush.msra.mxu0 %v384
    %652 = vmatpush.msra.mxu0 %v380
    %653 = vmatpush.msra.mxu0 %v376
    %654 = vmatpush.msra.mxu0 %v372
    %655 = vmatpush.msra.mxu0 %v368
    %656 = vmatpush.msra.mxu0 %v364
    %657 = vmatpush.msra.mxu0 %v360
    %658 = vmatpush.msra.mxu0 %v356
    %659 = vmatpush.msra.mxu0 %v352
    %660 = vmatmul.f32.gmra.mxu0 %v30
    %v661 = vpop.f32.mrf.mxu0
    %v662 = vadd.f32 %v642, %v661
    %663 = vdwg.mxu0
    %664 = vmatpush.msra.mxu0 %v93
    %665 = vmatpush.msra.mxu0 %v89
    %666 = vmatpush.msra.mxu0 %v85
    %667 = vmatpush.msra.mxu0 %v81
    %668 = vmatpush.msra.mxu0 %v77
    %669 = vmatpush.msra.mxu0 %v73
    %670 = vmatpush.msra.mxu0 %v69
    %671 = vmatpush.msra.mxu0 %v65
    %672 = vmatpush.msra.mxu0 %v61
    %673 = vmatpush.msra.mxu0 %v57
    %674 = vmatpush.msra.mxu0 %v53
    %675 = vmatpush.msra.mxu0 %v49
    %676 = vmatpush.msra.mxu0 %v45
    %677 = vmatpush.msra.mxu0 %v41
    %678 = vmatpush.msra.mxu0 %v37
    %679 = vmatpush.msra.mxu0 %v33
    %680 = vmatmul.f32.gmra.mxu0 %v25
    %v681 = vpop.f32.mrf.mxu0
    %v682 = vadd.f32 %v418, %v681
    %683 = vdwg.mxu0
    %684 = vmatpush.msra.mxu0 %v157
    %685 = vmatpush.msra.mxu0 %v153
    %686 = vmatpush.msra.mxu0 %v149
    %687 = vmatpush.msra.mxu0 %v145
    %688 = vmatpush.msra.mxu0 %v141
    %689 = vmatpush.msra.mxu0 %v137
    %690 = vmatpush.msra.mxu0 %v133
    %691 = vmatpush.msra.mxu0 %v129
    %692 = vmatpush.msra.mxu0 %v125
    %693 = vmatpush.msra.mxu0 %v121
    %694 = vmatpush.msra.mxu0 %v117
    %695 = vmatpush.msra.mxu0 %v113
    %696 = vmatpush.msra.mxu0 %v109
    %697 = vmatpush.msra.mxu0 %v105
    %698 = vmatpush.msra.mxu0 %v101
    %699 = vmatpush.msra.mxu0 %v97
    %700 = vmatmul.f32.gmra.mxu0 %v26
    %v701 = vpop.f32.mrf.mxu0
    %v702 = vadd.f32 %v682, %v701
    %703 = vdwg.mxu0
    %704 = vmatpush.msra.mxu0 %v221
    %705 = vmatpush.msra.mxu0 %v217
    %706 = vmatpush.msra.mxu0 %v213
    %707 = vmatpush.msra.mxu0 %v209
    %708 = vmatpush.msra.mxu0 %v205
    %709 = vmatpush.msra.mxu0 %v201
    %710 = vmatpush.msra.mxu0 %v197
    %711 = vmatpush.msra.mxu0 %v193
    %712 = vmatpush.msra.mxu0 %v189
    %713 = vmatpush.msra.mxu0 %v185
    %714 = vmatpush.msra.mxu0 %v181
    %715 = vmatpush.msra.mxu0 %v177
    %716 = vmatpush.msra.mxu0 %v173
    %717 = vmatpush.msra.mxu0 %v169
    %718 = vmatpush.msra.mxu0 %v165
    %719 = vmatpush.msra.mxu0 %v161
    %720 = vmatmul.f32.gmra.mxu0 %v27
    %v721 = vpop.f32.mrf.mxu0
    %v722 = vadd.f32 %v702, %v721
    %723 = vdwg.mxu0
    %724 = vmatpush.msra.mxu0 %v285
    %725 = vmatpush.msra.mxu0 %v281
    %726 = vmatpush.msra.mxu0 %v277
    %727 = vmatpush.msra.mxu0 %v273
    %728 = vmatpush.msra.mxu0 %v269
    %729 = vmatpush.msra.mxu0 %v265
    %730 = vmatpush.msra.mxu0 %v261
    %731 = vmatpush.msra.mxu0 %v257
    %732 = vmatpush.msra.mxu0 %v253
    %733 = vmatpush.msra.mxu0 %v249
    %734 = vmatpush.msra.mxu0 %v245
    %735 = vmatpush.msra.mxu0 %v241
    %736 = vmatpush.msra.mxu0 %v237
    %737 = vmatpush.msra.mxu0 %v233
    %738 = vmatpush.msra.mxu0 %v229
    %739 = vmatpush.msra.mxu0 %v225
    %740 = vmatmul.f32.gmra.mxu0 %v28
    %v741 = vpop.f32.mrf.mxu0
    %v742 = vadd.f32 %v722, %v741
    %743 = vdwg.mxu0
    %744 = vmatpush.msra.mxu0 %v349
    %745 = vmatpush.msra.mxu0 %v345
    %746 = vmatpush.msra.mxu0 %v341
    %747 = vmatpush.msra.mxu0 %v337
    %748 = vmatpush.msra.mxu0 %v333
    %749 = vmatpush.msra.mxu0 %v329
    %750 = vmatpush.msra.mxu0 %v325
    %751 = vmatpush.msra.mxu0 %v321
    %752 = vmatpush.msra.mxu0 %v317
    %753 = vmatpush.msra.mxu0 %v313
    %754 = vmatpush.msra.mxu0 %v309
    %755 = vmatpush.msra.mxu0 %v305
    %756 = vmatpush.msra.mxu0 %v301
    %757 = vmatpush.msra.mxu0 %v297
    %758 = vmatpush.msra.mxu0 %v293
    %759 = vmatpush.msra.mxu0 %v289
    %760 = vmatmul.f32.gmra.mxu0 %v29
    %v761 = vpop.f32.mrf.mxu0
    %v762 = vadd.f32 %v742, %v761
    %763 = vdwg.mxu0
    %764 = vmatpush.msra.mxu0 %v413
    %765 = vmatpush.msra.mxu0 %v409
    %766 = vmatpush.msra.mxu0 %v405
    %767 = vmatpush.msra.mxu0 %v401
    %768 = vmatpush.msra.mxu0 %v397
    %769 = vmatpush.msra.mxu0 %v393
    %770 = vmatpush.msra.mxu0 %v389
    %771 = vmatpush.msra.mxu0 %v385
    %772 = vmatpush.msra.mxu0 %v381
    %773 = vmatpush.msra.mxu0 %v377
    %774 = vmatpush.msra.mxu0 %v373
    %775 = vmatpush.msra.mxu0 %v369
    %776 = vmatpush.msra.mxu0 %v365
    %777 = vmatpush.msra.mxu0 %v361
    %778 = vmatpush.msra.mxu0 %v357
    %779 = vmatpush.msra.mxu0 %v353
    %780 = vmatmul.f32.gmra.mxu0 %v30
    %v781 = vpop.f32.mrf.mxu0
    %v782 = vadd.f32 %v762, %v781
    %783 = vdwg.mxu0
    %784 = vmatpush.msra.mxu0 %v94
    %785 = vmatpush.msra.mxu0 %v90
    %786 = vmatpush.msra.mxu0 %v86
    %787 = vmatpush.msra.mxu0 %v82
    %788 = vmatpush.msra.mxu0 %v78
    %789 = vmatpush.msra.mxu0 %v74
    %790 = vmatpush.msra.mxu0 %v70
    %791 = vmatpush.msra.mxu0 %v66
    %792 = vmatpush.msra.mxu0 %v62
    %793 = vmatpush.msra.mxu0 %v58
    %794 = vmatpush.msra.mxu0 %v54
    %795 = vmatpush.msra.mxu0 %v50
    %796 = vmatpush.msra.mxu0 %v46
    %797 = vmatpush.msra.mxu0 %v42
    %798 = vmatpush.msra.mxu0 %v38
    %799 = vmatpush.msra.mxu0 %v34
    %800 = vmatmul.f32.gmra.mxu0 %v25
    %v801 = vpop.f32.mrf.mxu0
    %v802 = vadd.f32 %v419, %v801
    %803 = vdwg.mxu0
    %804 = vmatpush.msra.mxu0 %v158
    %805 = vmatpush.msra.mxu0 %v154
    %806 = vmatpush.msra.mxu0 %v150
    %807 = vmatpush.msra.mxu0 %v146
    %808 = vmatpush.msra.mxu0 %v142
    %809 = vmatpush.msra.mxu0 %v138
    %810 = vmatpush.msra.mxu0 %v134
    %811 = vmatpush.msra.mxu0 %v130
    %812 = vmatpush.msra.mxu0 %v126
    %813 = vmatpush.msra.mxu0 %v122
    %814 = vmatpush.msra.mxu0 %v118
    %815 = vmatpush.msra.mxu0 %v114
    %816 = vmatpush.msra.mxu0 %v110
    %817 = vmatpush.msra.mxu0 %v106
    %818 = vmatpush.msra.mxu0 %v102
    %819 = vmatpush.msra.mxu0 %v98
    %820 = vmatmul.f32.gmra.mxu0 %v26
    %v821 = vpop.f32.mrf.mxu0
    %v822 = vadd.f32 %v802, %v821
    %823 = vdwg.mxu0
    %824 = vmatpush.msra.mxu0 %v222
    %825 = vmatpush.msra.mxu0 %v218
    %826 = vmatpush.msra.mxu0 %v214
    %827 = vmatpush.msra.mxu0 %v210
    %828 = vmatpush.msra.mxu0 %v206
    %829 = vmatpush.msra.mxu0 %v202
    %830 = vmatpush.msra.mxu0 %v198
    %831 = vmatpush.msra.mxu0 %v194
    %832 = vmatpush.msra.mxu0 %v190
    %833 = vmatpush.msra.mxu0 %v186
    %834 = vmatpush.msra.mxu0 %v182
    %835 = vmatpush.msra.mxu0 %v178
    %836 = vmatpush.msra.mxu0 %v174
    %837 = vmatpush.msra.mxu0 %v170
    %838 = vmatpush.msra.mxu0 %v166
    %839 = vmatpush.msra.mxu0 %v162
    %840 = vmatmul.f32.gmra.mxu0 %v27
    %v841 = vpop.f32.mrf.mxu0
    %v842 = vadd.f32 %v822, %v841
    %843 = vdwg.mxu0
    %844 = vmatpush.msra.mxu0 %v286
    %845 = vmatpush.msra.mxu0 %v282
    %846 = vmatpush.msra.mxu0 %v278
    %847 = vmatpush.msra.mxu0 %v274
    %848 = vmatpush.msra.mxu0 %v270
    %849 = vmatpush.msra.mxu0 %v266
    %850 = vmatpush.msra.mxu0 %v262
    %851 = vmatpush.msra.mxu0 %v258
    %852 = vmatpush.msra.mxu0 %v254
    %853 = vmatpush.msra.mxu0 %v250
    %854 = vmatpush.msra.mxu0 %v246
    %855 = vmatpush.msra.mxu0 %v242
    %856 = vmatpush.msra.mxu0 %v238
    %857 = vmatpush.msra.mxu0 %v234
    %858 = vmatpush.msra.mxu0 %v230
    %859 = vmatpush.msra.mxu0 %v226
    %860 = vmatmul.f32.gmra.mxu0 %v28
    %v861 = vpop.f32.mrf.mxu0
    %v862 = vadd.f32 %v842, %v861
    %863 = vdwg.mxu0
    %864 = vmatpush.msra.mxu0 %v350
    %865 = vmatpush.msra.mxu0 %v346
    %866 = vmatpush.msra.mxu0 %v342
    %867 = vmatpush.msra.mxu0 %v338
    %868 = vmatpush.msra.mxu0 %v334
    %869 = vmatpush.msra.mxu0 %v330
    %870 = vmatpush.msra.mxu0 %v326
    %871 = vmatpush.msra.mxu0 %v322
    %872 = vmatpush.msra.mxu0 %v318
    %873 = vmatpush.msra.mxu0 %v314
    %874 = vmatpush.msra.mxu0 %v310
    %875 = vmatpush.msra.mxu0 %v306
    %876 = vmatpush.msra.mxu0 %v302
    %877 = vmatpush.msra.mxu0 %v298
    %878 = vmatpush.msra.mxu0 %v294
    %879 = vmatpush.msra.mxu0 %v290
    %880 = vmatmul.f32.gmra.mxu0 %v29
    %v881 = vpop.f32.mrf.mxu0
    %v882 = vadd.f32 %v862, %v881
    %883 = vdwg.mxu0
    %884 = vmatpush.msra.mxu0 %v414
    %885 = vmatpush.msra.mxu0 %v410
    %886 = vmatpush.msra.mxu0 %v406
    %887 = vmatpush.msra.mxu0 %v402
    %888 = vmatpush.msra.mxu0 %v398
    %889 = vmatpush.msra.mxu0 %v394
    %890 = vmatpush.msra.mxu0 %v390
    %891 = vmatpush.msra.mxu0 %v386
    %892 = vmatpush.msra.mxu0 %v382
    %893 = vmatpush.msra.mxu0 %v378
    %894 = vmatpush.msra.mxu0 %v374
    %895 = vmatpush.msra.mxu0 %v370
    %896 = vmatpush.msra.mxu0 %v366
    %897 = vmatpush.msra.mxu0 %v362
    %898 = vmatpush.msra.mxu0 %v358
    %899 = vmatpush.msra.mxu0 %v354
    %900 = vmatmul.f32.gmra.mxu0 %v30
    %v901 = vpop.f32.mrf.mxu0
    %v902 = vadd.f32 %v882, %v901
    %903 = vdwg.mxu0
    %v904 = vmax.f32 %v542, 0.0
    %v905 = vmax.f32 %v662, 0.0
    %v906 = vmax.f32 %v782, 0.0
    %v907 = vmax.f32 %v902, 0.0
    %v908 = vld [vmem:[%s2] sm:$0xff]
    %v909 = vld [vmem:[%s2 + $0x8] sm:$0xff]
    %v910 = vld [vmem:[%s2 + $0x10] sm:$0xff]
    %v911 = vld [vmem:[%s2 + $0x18] sm:$0xff]
    %v912 = vld [vmem:[%s2 + $0x20] sm:$0xff]
    %v913 = vld [vmem:[%s2 + $0x28] sm:$0xff]
    %v914 = vld [vmem:[%s2 + $0x30] sm:$0xff]
    %v915 = vld [vmem:[%s2 + $0x38] sm:$0xff]
    %v916 = vld [vmem:[%s2 + $0x40] sm:$0xff]
    %v917 = vld [vmem:[%s2 + $0x48] sm:$0xff]
    %v918 = vld [vmem:[%s2 + $0x50] sm:$0xff]
    %v919 = vld [vmem:[%s2 + $0x58] sm:$0xff]
    %v920 = vld [vmem:[%s2 + $0x60] sm:$0xff]
    %v921 = vld [vmem:[%s2 + $0x68] sm:$0xff]
    %v922 = vld [vmem:[%s2 + $0x70] sm:$0xff]
    %v923 = vld [vmem:[%s2 + $0x78] sm:$0xff]
    %v924 = vld [vmem:[%s2 + $0x80] sm:$0xff]
    %v925 = vld [vmem:[%s2 + $0x88] sm:$0xff]
    %v926 = vld [vmem:[%s2 + $0x90] sm:$0xff]
    %v927 = vld [vmem:[%s2 + $0x98] sm:$0xff]
    %v928 = vld [vmem:[%s2 + $0xa0] sm:$0xff]
    %v929 = vld [vmem:[%s2 + $0xa8] sm:$0xff]
    %v930 = vld [vmem:[%s2 + $0xb0] sm:$0xff]
    %v931 = vld [vmem:[%s2 + $0xb8] sm:$0xff]
    %v932 = vld [vmem:[%s2 + $0xc0] sm:$0xff]
    %v933 = vld [vmem:[%s2 + $0xc8] sm:$0xff]
    %v934 = vld [vmem:[%s2 + $0xd0] sm:$0xff]
    %v935 = vld [vmem:[%s2 + $0xd8] sm:$0xff]
    %v936 = vld [vmem:[%s2 + $0xe0] sm:$0xff]
    %v937 = vld [vmem:[%s2 + $0xe8] sm:$0xff]
    %v938 = vld [vmem:[%s2 + $0xf0] sm:$0xff]
    %v939 = vld [vmem:[%s2 + $0xf8] sm:$0xff]
    %v940 = vld [vmem:[%s2 + $0x100] sm:$0xff]
    %v941 = vld [vmem:[%s2 + $0x108] sm:$0xff]
    %v942 = vld [vmem:[%s2 + $0x110] sm:$0xff]
    %v943 = vld [vmem:[%s2 + $0x118] sm:$0xff]
    %v944 = vld [vmem:[%s2 + $0x120] sm:$0xff]
    %v945 = vld [vmem:[%s2 + $0x128] sm:$0xff]
    %v946 = vld [vmem:[%s2 + $0x130] sm:$0xff]
    %v947 = vld [vmem:[%s2 + $0x138] sm:$0xff]
    %v948 = vld [vmem:[%s2 + $0x140] sm:$0xff]
    %v949 = vld [vmem:[%s2 + $0x148] sm:$0xff]
    %v950 = vld [vmem:[%s2 + $0x150] sm:$0xff]
    %v951 = vld [vmem:[%s2 + $0x158] sm:$0xff]
    %v952 = vld [vmem:[%s2 + $0x160] sm:$0xff]
    %v953 = vld [vmem:[%s2 + $0x168] sm:$0xff]
    %v954 = vld [vmem:[%s2 + $0x170] sm:$0xff]
    %v955 = vld [vmem:[%s2 + $0x178] sm:$0xff]
    %v956 = vld [vmem:[%s2 + $0x180] sm:$0xff]
    %v957 = vld [vmem:[%s2 + $0x188] sm:$0xff]
    %v958 = vld [vmem:[%s2 + $0x190] sm:$0xff]
    %v959 = vld [vmem:[%s2 + $0x198] sm:$0xff]
    %v960 = vld [vmem:[%s2 + $0x1a0] sm:$0xff]
    %v961 = vld [vmem:[%s2 + $0x1a8] sm:$0xff]
    %v962 = vld [vmem:[%s2 + $0x1b0] sm:$0xff]
    %v963 = vld [vmem:[%s2 + $0x1b8] sm:$0xff]
    %v964 = vld [vmem:[%s2 + $0x1c0] sm:$0xff]
    %v965 = vld [vmem:[%s2 + $0x1c8] sm:$0xff]
    %v966 = vld [vmem:[%s2 + $0x1d0] sm:$0xff]
    %v967 = vld [vmem:[%s2 + $0x1d8] sm:$0xff]
    %v968 = vld [vmem:[%s2 + $0x1e0] sm:$0xff]
    %v969 = vld [vmem:[%s2 + $0x1e8] sm:$0xff]
    %v970 = vld [vmem:[%s2 + $0x1f0] sm:$0xff]
    %v971 = vld [vmem:[%s2 + $0x1f8] sm:$0xff]
    %v972 = vld [vmem:[%s2 + $0x200] sm:$0xff]
    %v973 = vld [vmem:[%s2 + $0x208] sm:$0xff]
    %v974 = vld [vmem:[%s2 + $0x210] sm:$0xff]
    %v975 = vld [vmem:[%s2 + $0x218] sm:$0xff]
    %v976 = vld [vmem:[%s2 + $0x220] sm:$0xff]
    %v977 = vld [vmem:[%s2 + $0x228] sm:$0xff]
    %v978 = vld [vmem:[%s2 + $0x230] sm:$0xff]
    %v979 = vld [vmem:[%s2 + $0x238] sm:$0xff]
    %v980 = vld [vmem:[%s2 + $0x240] sm:$0xff]
    %v981 = vld [vmem:[%s2 + $0x248] sm:$0xff]
    %v982 = vld [vmem:[%s2 + $0x250] sm:$0xff]
    %v983 = vld [vmem:[%s2 + $0x258] sm:$0xff]
    %v984 = vld [vmem:[%s2 + $0x260] sm:$0xff]
    %v985 = vld [vmem:[%s2 + $0x268] sm:$0xff]
    %v986 = vld [vmem:[%s2 + $0x270] sm:$0xff]
    %v987 = vld [vmem:[%s2 + $0x278] sm:$0xff]
    %v988 = vld [vmem:[%s2 + $0x280] sm:$0xff]
    %v989 = vld [vmem:[%s2 + $0x288] sm:$0xff]
    %v990 = vld [vmem:[%s2 + $0x290] sm:$0xff]
    %v991 = vld [vmem:[%s2 + $0x298] sm:$0xff]
    %v992 = vld [vmem:[%s2 + $0x2a0] sm:$0xff]
    %v993 = vld [vmem:[%s2 + $0x2a8] sm:$0xff]
    %v994 = vld [vmem:[%s2 + $0x2b0] sm:$0xff]
    %v995 = vld [vmem:[%s2 + $0x2b8] sm:$0xff]
    %v996 = vld [vmem:[%s2 + $0x2c0] sm:$0xff]
    %v997 = vld [vmem:[%s2 + $0x2c8] sm:$0xff]
    %v998 = vld [vmem:[%s2 + $0x2d0] sm:$0xff]
    %v999 = vld [vmem:[%s2 + $0x2d8] sm:$0xff]
    %v1000 = vld [vmem:[%s2 + $0x2e0] sm:$0xff]
    %v1001 = vld [vmem:[%s2 + $0x2e8] sm:$0xff]
    %v1002 = vld [vmem:[%s2 + $0x2f0] sm:$0xff]
    %v1003 = vld [vmem:[%s2 + $0x2f8] sm:$0xff]
    %v1004 = vld [vmem:[%s2 + $0x300] sm:$0xff]
    %v1005 = vld [vmem:[%s2 + $0x308] sm:$0xff]
    %v1006 = vld [vmem:[%s2 + $0x310] sm:$0xff]
    %v1007 = vld [vmem:[%s2 + $0x318] sm:$0xff]
    %v1008 = vld [vmem:[%s2 + $0x320] sm:$0xff]
    %v1009 = vld [vmem:[%s2 + $0x328] sm:$0xff]
    %v1010 = vld [vmem:[%s2 + $0x330] sm:$0xff]
    %v1011 = vld [vmem:[%s2 + $0x338] sm:$0xff]
    %v1012 = vld [vmem:[%s2 + $0x340] sm:$0xff]
    %v1013 = vld [vmem:[%s2 + $0x348] sm:$0xff]
    %v1014 = vld [vmem:[%s2 + $0x350] sm:$0xff]
    %v1015 = vld [vmem:[%s2 + $0x358] sm:$0xff]
    %v1016 = vld [vmem:[%s2 + $0x360] sm:$0xff]
    %v1017 = vld [vmem:[%s2 + $0x368] sm:$0xff]
    %v1018 = vld [vmem:[%s2 + $0x370] sm:$0xff]
    %v1019 = vld [vmem:[%s2 + $0x378] sm:$0xff]
    %v1020 = vld [vmem:[%s2 + $0x380] sm:$0xff]
    %v1021 = vld [vmem:[%s2 + $0x388] sm:$0xff]
    %v1022 = vld [vmem:[%s2 + $0x390] sm:$0xff]
    %v1023 = vld [vmem:[%s2 + $0x398] sm:$0xff]
    %v1024 = vld [vmem:[%s2 + $0x3a0] sm:$0xff]
    %v1025 = vld [vmem:[%s2 + $0x3a8] sm:$0xff]
    %v1026 = vld [vmem:[%s2 + $0x3b0] sm:$0xff]
    %v1027 = vld [vmem:[%s2 + $0x3b8] sm:$0xff]
    %v1028 = vld [vmem:[%s2 + $0x3c0] sm:$0xff]
    %v1029 = vld [vmem:[%s2 + $0x3c8] sm:$0xff]
    %v1030 = vld [vmem:[%s2 + $0x3d0] sm:$0xff]
    %v1031 = vld [vmem:[%s2 + $0x3d8] sm:$0xff]
    %v1032 = vld [vmem:[%s2 + $0x3e0] sm:$0xff]
    %v1033 = vld [vmem:[%s2 + $0x3e8] sm:$0xff]
    %v1034 = vld [vmem:[%s2 + $0x3f0] sm:$0xff]
    %v1035 = vld [vmem:[%s2 + $0x3f8] sm:$0xff]
    %v1037 = vperm.slane %v22, 0
    %v1038 = vperm.slane %v22, 1
    %1041 = vmatpush.msra.mxu0 %v938
    %1042 = vmatpush.msra.mxu0 %v936
    %1043 = vmatpush.msra.mxu0 %v934
    %1044 = vmatpush.msra.mxu0 %v932
    %1045 = vmatpush.msra.mxu0 %v930
    %1046 = vmatpush.msra.mxu0 %v928
    %1047 = vmatpush.msra.mxu0 %v926
    %1048 = vmatpush.msra.mxu0 %v924
    %1049 = vmatpush.msra.mxu0 %v922
    %1050 = vmatpush.msra.mxu0 %v920
    %1051 = vmatpush.msra.mxu0 %v918
    %1052 = vmatpush.msra.mxu0 %v916
    %1053 = vmatpush.msra.mxu0 %v914
    %1054 = vmatpush.msra.mxu0 %v912
    %1055 = vmatpush.msra.mxu0 %v910
    %1056 = vmatpush.msra.mxu0 %v908
    %1057 = vmatmul.f32.gmra.mxu0 %v904
    %v1058 = vpop.f32.mrf.mxu0
    %v1059 = vadd.f32 %v1037, %v1058
    %1060 = vdwg.mxu0
    %1061 = vmatpush.msra.mxu0 %v970
    %1062 = vmatpush.msra.mxu0 %v968
    %1063 = vmatpush.msra.mxu0 %v966
    %1064 = vmatpush.msra.mxu0 %v964
    %1065 = vmatpush.msra.mxu0 %v962
    %1066 = vmatpush.msra.mxu0 %v960
    %1067 = vmatpush.msra.mxu0 %v958
    %1068 = vmatpush.msra.mxu0 %v956
    %1069 = vmatpush.msra.mxu0 %v954
    %1070 = vmatpush.msra.mxu0 %v952
    %1071 = vmatpush.msra.mxu0 %v950
    %1072 = vmatpush.msra.mxu0 %v948
    %1073 = vmatpush.msra.mxu0 %v946
    %1074 = vmatpush.msra.mxu0 %v944
    %1075 = vmatpush.msra.mxu0 %v942
    %1076 = vmatpush.msra.mxu0 %v940
    %1077 = vmatmul.f32.gmra.mxu0 %v905
    %v1078 = vpop.f32.mrf.mxu0
    %v1079 = vadd.f32 %v1059, %v1078
    %1080 = vdwg.mxu0
    %1081 = vmatpush.msra.mxu0 %v1002
    %1082 = vmatpush.msra.mxu0 %v1000
    %1083 = vmatpush.msra.mxu0 %v998
    %1084 = vmatpush.msra.mxu0 %v996
    %1085 = vmatpush.msra.mxu0 %v994
    %1086 = vmatpush.msra.mxu0 %v992
    %1087 = vmatpush.msra.mxu0 %v990
    %1088 = vmatpush.msra.mxu0 %v988
    %1089 = vmatpush.msra.mxu0 %v986
    %1090 = vmatpush.msra.mxu0 %v984
    %1091 = vmatpush.msra.mxu0 %v982
    %1092 = vmatpush.msra.mxu0 %v980
    %1093 = vmatpush.msra.mxu0 %v978
    %1094 = vmatpush.msra.mxu0 %v976
    %1095 = vmatpush.msra.mxu0 %v974
    %1096 = vmatpush.msra.mxu0 %v972
    %1097 = vmatmul.f32.gmra.mxu0 %v906
    %v1098 = vpop.f32.mrf.mxu0
    %v1099 = vadd.f32 %v1079, %v1098
    %1100 = vdwg.mxu0
    %1101 = vmatpush.msra.mxu0 %v1034
    %1102 = vmatpush.msra.mxu0 %v1032
    %1103 = vmatpush.msra.mxu0 %v1030
    %1104 = vmatpush.msra.mxu0 %v1028
    %1105 = vmatpush.msra.mxu0 %v1026
    %1106 = vmatpush.msra.mxu0 %v1024
    %1107 = vmatpush.msra.mxu0 %v1022
    %1108 = vmatpush.msra.mxu0 %v1020
    %1109 = vmatpush.msra.mxu0 %v1018
    %1110 = vmatpush.msra.mxu0 %v1016
    %1111 = vmatpush.msra.mxu0 %v1014
    %1112 = vmatpush.msra.mxu0 %v1012
    %1113 = vmatpush.msra.mxu0 %v1010
    %1114 = vmatpush.msra.mxu0 %v1008
    %1115 = vmatpush.msra.mxu0 %v1006
    %1116 = vmatpush.msra.mxu0 %v1004
    %1117 = vmatmul.f32.gmra.mxu0 %v907
    %v1118 = vpop.f32.mrf.mxu0
    %v1119 = vadd.f32 %v1099, %v1118
    %1120 = vdwg.mxu0
    %1121 = vmatpush.msra.mxu0 %v939
    %1122 = vmatpush.msra.mxu0 %v937
    %1123 = vmatpush.msra.mxu0 %v935
    %1124 = vmatpush.msra.mxu0 %v933
    %1125 = vmatpush.msra.mxu0 %v931
    %1126 = vmatpush.msra.mxu0 %v929
    %1127 = vmatpush.msra.mxu0 %v927
    %1128 = vmatpush.msra.mxu0 %v925
    %1129 = vmatpush.msra.mxu0 %v923
    %1130 = vmatpush.msra.mxu0 %v921
    %1131 = vmatpush.msra.mxu0 %v919
    %1132 = vmatpush.msra.mxu0 %v917
    %1133 = vmatpush.msra.mxu0 %v915
    %1134 = vmatpush.msra.mxu0 %v913
    %1135 = vmatpush.msra.mxu0 %v911
    %1136 = vmatpush.msra.mxu0 %v909
    %1137 = vmatmul.f32.gmra.mxu0 %v904
    %v1138 = vpop.f32.mrf.mxu0
    %v1139 = vadd.f32 %v1038, %v1138
    %1140 = vdwg.mxu0
    %1141 = vmatpush.msra.mxu0 %v971
    %1142 = vmatpush.msra.mxu0 %v969
    %1143 = vmatpush.msra.mxu0 %v967
    %1144 = vmatpush.msra.mxu0 %v965
    %1145 = vmatpush.msra.mxu0 %v963
    %1146 = vmatpush.msra.mxu0 %v961
    %1147 = vmatpush.msra.mxu0 %v959
    %1148 = vmatpush.msra.mxu0 %v957
    %1149 = vmatpush.msra.mxu0 %v955
    %1150 = vmatpush.msra.mxu0 %v953
    %1151 = vmatpush.msra.mxu0 %v951
    %1152 = vmatpush.msra.mxu0 %v949
    %1153 = vmatpush.msra.mxu0 %v947
    %1154 = vmatpush.msra.mxu0 %v945
    %1155 = vmatpush.msra.mxu0 %v943
    %1156 = vmatpush.msra.mxu0 %v941
    %1157 = vmatmul.f32.gmra.mxu0 %v905
    %v1158 = vpop.f32.mrf.mxu0
    %v1159 = vadd.f32 %v1139, %v1158
    %1160 = vdwg.mxu0
    %1161 = vmatpush.msra.mxu0 %v1003
    %1162 = vmatpush.msra.mxu0 %v1001
    %1163 = vmatpush.msra.mxu0 %v999
    %1164 = vmatpush.msra.mxu0 %v997
    %1165 = vmatpush.msra.mxu0 %v995
    %1166 = vmatpush.msra.mxu0 %v993
    %1167 = vmatpush.msra.mxu0 %v991
    %1168 = vmatpush.msra.mxu0 %v989
    %1169 = vmatpush.msra.mxu0 %v987
    %1170 = vmatpush.msra.mxu0 %v985
    %1171 = vmatpush.msra.mxu0 %v983
    %1172 = vmatpush.msra.mxu0 %v981
    %1173 = vmatpush.msra.mxu0 %v979
    %1174 = vmatpush.msra.mxu0 %v977
    %1175 = vmatpush.msra.mxu0 %v975
    %1176 = vmatpush.msra.mxu0 %v973
    %1177 = vmatmul.f32.gmra.mxu0 %v906
    %v1178 = vpop.f32.mrf.mxu0
    %v1179 = vadd.f32 %v1159, %v1178
    %1180 = vdwg.mxu0
    %1181 = vmatpush.msra.mxu0 %v1035
    %1182 = vmatpush.msra.mxu0 %v1033
    %1183 = vmatpush.msra.mxu0 %v1031
    %1184 = vmatpush.msra.mxu0 %v1029
    %1185 = vmatpush.msra.mxu0 %v1027
    %1186 = vmatpush.msra.mxu0 %v1025
    %1187 = vmatpush.msra.mxu0 %v1023
    %1188 = vmatpush.msra.mxu0 %v1021
    %1189 = vmatpush.msra.mxu0 %v1019
    %1190 = vmatpush.msra.mxu0 %v1017
    %1191 = vmatpush.msra.mxu0 %v1015
    %1192 = vmatpush.msra.mxu0 %v1013
    %1193 = vmatpush.msra.mxu0 %v1011
    %1194 = vmatpush.msra.mxu0 %v1009
    %1195 = vmatpush.msra.mxu0 %v1007
    %1196 = vmatpush.msra.mxu0 %v1005
    %1197 = vmatmul.f32.gmra.mxu0 %v907
    %v1198 = vpop.f32.mrf.mxu0
    %v1199 = vadd.f32 %v1179, %v1198
    %1200 = vdwg.mxu0
    %v1201 = vmax.f32 %v1119, 0.0
    %v1202 = vmax.f32 %v1199, 0.0
    %v1203 = vld [vmem:[%s4] sm:$0xff]
    %v1204 = vld [vmem:[%s4 + $0x8] sm:$0xff]
    %v1205 = vld [vmem:[%s4 + $0x10] sm:$0xff]
    %v1206 = vld [vmem:[%s4 + $0x18] sm:$0xff]
    %v1207 = vld [vmem:[%s4 + $0x20] sm:$0xff]
    %v1208 = vld [vmem:[%s4 + $0x28] sm:$0xff]
    %v1209 = vld [vmem:[%s4 + $0x30] sm:$0xff]
    %v1210 = vld [vmem:[%s4 + $0x38] sm:$0xff]
    %v1211 = vld [vmem:[%s4 + $0x40] sm:$0xff]
    %v1212 = vld [vmem:[%s4 + $0x48] sm:$0xff]
    %v1213 = vld [vmem:[%s4 + $0x50] sm:$0xff]
    %v1214 = vld [vmem:[%s4 + $0x58] sm:$0xff]
    %v1215 = vld [vmem:[%s4 + $0x60] sm:$0xff]
    %v1216 = vld [vmem:[%s4 + $0x68] sm:$0xff]
    %v1217 = vld [vmem:[%s4 + $0x70] sm:$0xff]
    %v1218 = vld [vmem:[%s4 + $0x78] sm:$0xff]
    %v1219 = vld [vmem:[%s4 + $0x80] sm:$0xff]
    %v1220 = vld [vmem:[%s4 + $0x88] sm:$0xff]
    %v1221 = vld [vmem:[%s4 + $0x90] sm:$0xff]
    %v1222 = vld [vmem:[%s4 + $0x98] sm:$0xff]
    %v1223 = vld [vmem:[%s4 + $0xa0] sm:$0xff]
    %v1224 = vld [vmem:[%s4 + $0xa8] sm:$0xff]
    %v1225 = vld [vmem:[%s4 + $0xb0] sm:$0xff]
    %v1226 = vld [vmem:[%s4 + $0xb8] sm:$0xff]
    %v1227 = vld [vmem:[%s4 + $0xc0] sm:$0xff]
    %v1228 = vld [vmem:[%s4 + $0xc8] sm:$0xff]
    %v1229 = vld [vmem:[%s4 + $0xd0] sm:$0xff]
    %v1230 = vld [vmem:[%s4 + $0xd8] sm:$0xff]
    %v1231 = vld [vmem:[%s4 + $0xe0] sm:$0xff]
    %v1232 = vld [vmem:[%s4 + $0xe8] sm:$0xff]
    %v1233 = vld [vmem:[%s4 + $0xf0] sm:$0xff]
    %v1234 = vld [vmem:[%s4 + $0xf8] sm:$0xff]
    %v1235 = vld [vmem:[%s4 + $0x100] sm:$0xff]
    %v1236 = vld [vmem:[%s4 + $0x108] sm:$0xff]
    %v1237 = vld [vmem:[%s4 + $0x110] sm:$0xff]
    %v1238 = vld [vmem:[%s4 + $0x118] sm:$0xff]
    %v1239 = vld [vmem:[%s4 + $0x120] sm:$0xff]
    %v1240 = vld [vmem:[%s4 + $0x128] sm:$0xff]
    %v1241 = vld [vmem:[%s4 + $0x130] sm:$0xff]
    %v1242 = vld [vmem:[%s4 + $0x138] sm:$0xff]
    %v1243 = vld [vmem:[%s4 + $0x140] sm:$0xff]
    %v1244 = vld [vmem:[%s4 + $0x148] sm:$0xff]
    %v1245 = vld [vmem:[%s4 + $0x150] sm:$0xff]
    %v1246 = vld [vmem:[%s4 + $0x158] sm:$0xff]
    %v1247 = vld [vmem:[%s4 + $0x160] sm:$0xff]
    %v1248 = vld [vmem:[%s4 + $0x168] sm:$0xff]
    %v1249 = vld [vmem:[%s4 + $0x170] sm:$0xff]
    %v1250 = vld [vmem:[%s4 + $0x178] sm:$0xff]
    %v1251 = vld [vmem:[%s4 + $0x180] sm:$0xff]
    %v1252 = vld [vmem:[%s4 + $0x188] sm:$0xff]
    %v1253 = vld [vmem:[%s4 + $0x190] sm:$0xff]
    %v1254 = vld [vmem:[%s4 + $0x198] sm:$0xff]
    %v1255 = vld [vmem:[%s4 + $0x1a0] sm:$0xff]
    %v1256 = vld [vmem:[%s4 + $0x1a8] sm:$0xff]
    %v1257 = vld [vmem:[%s4 + $0x1b0] sm:$0xff]
    %v1258 = vld [vmem:[%s4 + $0x1b8] sm:$0xff]
    %v1259 = vld [vmem:[%s4 + $0x1c0] sm:$0xff]
    %v1260 = vld [vmem:[%s4 + $0x1c8] sm:$0xff]
    %v1261 = vld [vmem:[%s4 + $0x1d0] sm:$0xff]
    %v1262 = vld [vmem:[%s4 + $0x1d8] sm:$0xff]
    %v1263 = vld [vmem:[%s4 + $0x1e0] sm:$0xff]
    %v1264 = vld [vmem:[%s4 + $0x1e8] sm:$0xff]
    %v1265 = vld [vmem:[%s4 + $0x1f0] sm:$0xff]
    %v1266 = vld [vmem:[%s4 + $0x1f8] sm:$0xff]
    %v1269 = vrot.slane %v1201, 4
    %v1270 = vrot.slane %v1202, 4
    %1273 = vmatpush.msra.mxu0 %v1250
    %1274 = vmatpush.msra.mxu0 %v1249
    %1275 = vmatpush.msra.mxu0 %v1248
    %1276 = vmatpush.msra.mxu0 %v1247
    %1277 = vmatpush.msra.mxu0 %v1246
    %1278 = vmatpush.msra.mxu0 %v1245
    %1279 = vmatpush.msra.mxu0 %v1244
    %1280 = vmatpush.msra.mxu0 %v1243
    %1281 = vmatpush.msra.mxu0 %v1242
    %1282 = vmatpush.msra.mxu0 %v1241
    %1283 = vmatpush.msra.mxu0 %v1240
    %1284 = vmatpush.msra.mxu0 %v1239
    %1285 = vmatpush.msra.mxu0 %v1238
    %1286 = vmatpush.msra.mxu0 %v1237
    %1287 = vmatpush.msra.mxu0 %v1236
    %1288 = vmatpush.msra.mxu0 %v1235
    %1289 = vmatmul.f32.gmra.mxu0 %v1269
    %v1290 = vpop.f32.mrf.mxu0
    %v1291 = vadd.f32 0.0, %v1290
    %1292 = vdwg.mxu0
    %1293 = vmatpush.msra.mxu0 %v1266
    %1294 = vmatpush.msra.mxu0 %v1265
    %1295 = vmatpush.msra.mxu0 %v1264
    %1296 = vmatpush.msra.mxu0 %v1263
    %1297 = vmatpush.msra.mxu0 %v1262
    %1298 = vmatpush.msra.mxu0 %v1261
    %1299 = vmatpush.msra.mxu0 %v1260
    %1300 = vmatpush.msra.mxu0 %v1259
    %1301 = vmatpush.msra.mxu0 %v1258
    %1302 = vmatpush.msra.mxu0 %v1257
    %1303 = vmatpush.msra.mxu0 %v1256
    %1304 = vmatpush.msra.mxu0 %v1255
    %1305 = vmatpush.msra.mxu0 %v1254
    %1306 = vmatpush.msra.mxu0 %v1253
    %1307 = vmatpush.msra.mxu0 %v1252
    %1308 = vmatpush.msra.mxu0 %v1251
    %1309 = vmatmul.f32.gmra.mxu0 %v1270
    %v1310 = vpop.f32.mrf.mxu0
    %v1311 = vadd.f32 %v1291, %v1310
    %1312 = vdwg.mxu0
    %1313 = vmatpush.msra.mxu0 %v1218
    %1314 = vmatpush.msra.mxu0 %v1217
    %1315 = vmatpush.msra.mxu0 %v1216
    %1316 = vmatpush.msra.mxu0 %v1215
    %1317 = vmatpush.msra.mxu0 %v1214
    %1318 = vmatpush.msra.mxu0 %v1213
    %1319 = vmatpush.msra.mxu0 %v1212
    %1320 = vmatpush.msra.mxu0 %v1211
    %1321 = vmatpush.msra.mxu0 %v1210
    %1322 = vmatpush.msra.mxu0 %v1209
    %1323 = vmatpush.msra.mxu0 %v1208
    %1324 = vmatpush.msra.mxu0 %v1207
    %1325 = vmatpush.msra.mxu0 %v1206
    %1326 = vmatpush.msra.mxu0 %v1205
    %1327 = vmatpush.msra.mxu0 %v1204
    %1328 = vmatpush.msra.mxu0 %v1203
    %1329 = vmatmul.f32.gmra.mxu0 %v1201
    %v1330 = vpop.f32.mrf.mxu0
    %v1331 = vadd.f32 %v1311, %v1330
    %1332 = vdwg.mxu0
    %1333 = vmatpush.msra.mxu0 %v1234
    %1334 = vmatpush.msra.mxu0 %v1233
    %1335 = vmatpush.msra.mxu0 %v1232
    %1336 = vmatpush.msra.mxu0 %v1231
    %1337 = vmatpush.msra.mxu0 %v1230
    %1338 = vmatpush.msra.mxu0 %v1229
    %1339 = vmatpush.msra.mxu0 %v1228
    %1340 = vmatpush.msra.mxu0 %v1227
    %1341 = vmatpush.msra.mxu0 %v1226
    %1342 = vmatpush.msra.mxu0 %v1225
    %1343 = vmatpush.msra.mxu0 %v1224
    %1344 = vmatpush.msra.mxu0 %v1223
    %1345 = vmatpush.msra.mxu0 %v1222
    %1346 = vmatpush.msra.mxu0 %v1221
    %1347 = vmatpush.msra.mxu0 %v1220
    %1348 = vmatpush.msra.mxu0 %v1219
    %1349 = vmatmul.f32.gmra.mxu0 %v1202
    %v1350 = vpop.f32.mrf.mxu0
    %v1351 = vadd.f32 %v1331, %v1350
    %1352 = vdwg.mxu0
    %v1354 = vperm.slane %v23, 0
    %v1356 = vadd.f32 %v1351, %v1354
    %v1357 = vmax.f32 %v1356, 0.0
    %v1359 = vperm.slane %v24, 0
    %v1361 = vmul.f32 %v1357, %v1359
    %vm1362 = vcmask 322560
    %v1363 = vsel %vm1362, %v1361, 0.0
    %1364 = vadd.xlane.f32.xlu0 %v1363
    %v1365 = vpop.xlane.xlu0 %1364
    %vm1366 = vcmask 1043456
    %v1367 = vsel %vm1366, %v1365, 0.0
    %v1368 = vrot.slane %v1367, 4
    %v1369 = vadd.f32 %v1367, %v1368
    %v1370 = vrot.slane %v1369, 2
    %v1371 = vadd.f32 %v1369, %v1370
    %v1372 = vrot.slane %v1371, 1
    %v1373 = vadd.f32 %v1371, %v1372
    %vm1374 = vcmask 0
    %1375 = vst.msk [vmem:[#allocation2] sm:$0x1] %vm1374, %v1373
    // Predicated region
    $region22: #{_forward_impl.1} parent=1 // pred_check
      _
    $region23: #{_forward_impl.1} parent=1 // pred_check_branch
      %1377 = sbr.rel (0) target = $region25
    $region24: #{_forward_impl.1} parent=1 // pred_region
      %1379 = vsyncadd [#allocation3], 0
      %s1381 = sshll.u32 [#allocation2], 4
      %s1382 = int_to_ptr.vmem [resolvable:$true] %s1381
      %s1383 = sshll.u32 %s5, 4
      %s1384 = int_to_ptr.hbm [resolvable:$true] %s1383
      %1386 = dma.vmem_to_hbm [thread:$0]  %s1382, 16, %s1384, [#allocation3]
    $region25: #{_forward_impl.1} parent=1 // pred_fallthru
      _
    // Predicated region
    $region26: #{_forward_impl.1} parent=1 // pred_check
      _
    $region27: #{_forward_impl.1} parent=1 // pred_check_branch
      %1388 = sbr.rel (0) target = $region29
    $region28: #{_forward_impl.1} parent=1 // pred_region
      %1390 = dma.done [#allocation3], 16
    $region29: #{_forward_impl.1} parent=1 // pred_fallthru
      _
    %1391 = vsyncpa [#allocation3], 1

</llo_original>
